<compile_context>
chip_gen: v7x
topology: tpu7x:2x2x1
jax: 0.10.0
libtpu: 0.0.40
codegen_flags: <defaults>
</compile_context>

<pallas_src>
import functools

import jax
import jax.numpy as jnp
from jax import lax
from jax.experimental import pallas as pl
from jax.experimental.pallas import tpu as pltpu

LAMBDA_GP = 30.0


def _round_up(x, m):
    return (x + m - 1) // m * m


def _epilogue(bsz, h_real, h_fake, gram, eps_ref, b1_ref, w2t_ref,
              scalars_ref, gnorm_ref):
    """Scores, analytic input-gradient norm, gp and critic loss (all f32)."""
    b1 = b1_ref[...]                                   # (1, Hid)
    w2t = w2t_ref[...]                                 # (1, Hid)
    eps = eps_ref[...]                                 # (B, 1)

    # Critic scores on real / fake: second layer = VPU multiply + lane reduce.
    # (b2 cancels in loss_c and has no effect on dC/dx, so it is not shipped.)
    s_real = jnp.sum(jnp.tanh(h_real + b1) * w2t, axis=1, keepdims=True)
    s_fake = jnp.sum(jnp.tanh(h_fake + b1) * w2t, axis=1, keepdims=True)
    loss_c = jnp.mean(s_fake - s_real)

    # interpolated = eps*real + (1-eps)*fake; by linearity of x @ W1 the
    # interpolated pre-activation is formed directly from h_real / h_fake.
    h_i = eps * h_real + (1.0 - eps) * h_fake + b1
    a_i = jnp.tanh(h_i)
    # d critic / d x = ((1 - tanh(h_i)^2) * w2^T) @ W1^T  (analytic gradient)
    d_h = (1.0 - a_i * a_i) * w2t                      # (B, Hid)
    # |grad|^2 = d_h (W1^T W1) d_h^T  — Gram trick, no (B, D) intermediate.
    q = jnp.dot(d_h, gram, preferred_element_type=jnp.float32)
    gn2 = jnp.maximum(jnp.sum(q * d_h, axis=1, keepdims=True), 0.0)
    gnorm = jnp.sqrt(gn2)                              # (B, 1)
    gp = jnp.mean((gnorm - 1.0) ** 2) * LAMBDA_GP

    # Lane-dense outputs.  gnorm column -> (1, B) row via iota-diag + sublane
    # reduce (robust sublane->lane transfer); the two scalars packed as (1, 2).
    ii = lax.broadcasted_iota(jnp.int32, (bsz, bsz), 0)
    jj = lax.broadcasted_iota(jnp.int32, (bsz, bsz), 1)
    gnorm_ref[...] = jnp.sum(jnp.where(ii == jj, gnorm, 0.0), axis=0,
                             keepdims=True)            # (1, B)
    sidx = lax.broadcasted_iota(jnp.int32, (1, 2), 1)
    scalars_ref[...] = jnp.where(sidx == 0, loss_c + gp, loss_c)


def _single_step_kernel(real_ref, fake_ref, w1_ref, eps_ref, b1_ref, w2t_ref,
                        scalars_ref, gnorm_ref, *, bsz):
    # Whole D fits in one grid step: no accumulator scratch, no pl.when.
    w1 = w1_ref[...]
    h_real = jnp.dot(real_ref[...], w1, preferred_element_type=jnp.float32)
    h_fake = jnp.dot(fake_ref[...], w1, preferred_element_type=jnp.float32)
    gram = lax.dot_general(w1, w1, (((0,), (0,)), ((), ())),
                           preferred_element_type=jnp.float32)
    _epilogue(bsz, h_real, h_fake, gram, eps_ref, b1_ref, w2t_ref,
              scalars_ref, gnorm_ref)


def _multi_step_kernel(real_ref, fake_ref, w1_ref, eps_ref, b1_ref, w2t_ref,
                       scalars_ref, gnorm_ref, hr_acc, hf_acc, gram_acc, *,
                       bsz):
    k = pl.program_id(0)

    @pl.when(k == 0)
    def _():
        hr_acc[...] = jnp.zeros_like(hr_acc)
        hf_acc[...] = jnp.zeros_like(hf_acc)
        gram_acc[...] = jnp.zeros_like(gram_acc)

    w1 = w1_ref[...]
    hr_acc[...] += jnp.dot(real_ref[...], w1, preferred_element_type=jnp.float32)
    hf_acc[...] += jnp.dot(fake_ref[...], w1, preferred_element_type=jnp.float32)
    # Gram matrix accumulated from the already-DMA'd W1 tile: no separate
    # HBM pass over W1 in the wrapper.  Extra (hid x tk)x(tk x hid) matmul is
    # negligible (the MXU is idle in this HBM-bound kernel).
    gram_acc[...] += lax.dot_general(w1, w1, (((0,), (0,)), ((), ())),
                                     preferred_element_type=jnp.float32)

    @pl.when(k == pl.num_programs(0) - 1)
    def _():
        _epilogue(bsz, hr_acc[...], hf_acc[...], gram_acc[...],
                  eps_ref, b1_ref, w2t_ref, scalars_ref, gnorm_ref)


@jax.jit
def critic_loss(real_nchw, fake_nchw, eps, w1, b1, w2, b2):
    """Returns (loss_c + gp, gradient_norm, loss_c) — same as CriticLoss.forward."""
    b = real_nchw.shape[0]
    d = real_nchw.shape[1] * real_nchw.shape[2] * real_nchw.shape[3]
    hid = w1.shape[1]

    # Row-major flatten (matches torch .view(batch, -1)); free reshape, native
    # dtype — no concat / cast passes in the wrapper.
    real = real_nchw.reshape(b, d)
    fake = fake_nchw.reshape(b, d)
    w1k = w1

    eps2 = eps.reshape(b, 1).astype(jnp.float32)
    b1r = b1.reshape(1, hid).astype(jnp.float32)
    w2t = w2.reshape(1, hid).astype(jnp.float32)   # == w2.T for the (hid,1) vec
    # b2 intentionally NOT passed: it cancels in loss_c and does not affect
    # d critic / d x, so it has no effect on any returned value.

    # ---- K (feature) tile selection -------------------------------------
    xbytes = real.dtype.itemsize
    wbytes = w1k.dtype.itemsize
    # double-buffered bytes per K column: real + fake rows + one W1 column set
    per_col = 2 * (2 * b * xbytes + hid * wbytes)
    budget = 16 * 1024 * 1024                       # conservative on v5e/v6e/v7x
    cap = max(128, (budget // per_col) // 128 * 128)

    d_pad = _round_up(d, 128)
    if d_pad <= cap:
        tile_k = d_pad                              # whole D in one grid step
    else:
        # largest multiple-of-128 divisor of d_pad that fits the budget
        m = d_pad // 128
        t = 1
        for cand in range(cap // 128, 0, -1):
            if m % cand == 0:
                t = cand
                break
        tile_k = 128 * t
        if tile_k < min(cap, 8 * 1024):
            # no decent divisor: pad D to a multiple of a large tile instead
            # (zero padding is a no-op for x @ W1 and W1^T W1)
            tile_k = min(cap, 8 * 1024)
            d_pad = _round_up(d_pad, tile_k)
    num_k = d_pad // tile_k

    if d_pad != d:
        real = jnp.pad(real, ((0, 0), (0, d_pad - d)))
        fake = jnp.pad(fake, ((0, 0), (0, d_pad - d)))
        w1k = jnp.pad(w1k, ((0, d_pad - d), (0, 0)))

    # Explicit VMEM limit so large tiles also fit v7x's 32 MiB default scoped /
    # 64 MiB physical VMEM (double-buffered inputs + small accumulators).
    est = per_col * tile_k + 4 * (2 * b * hid + hid * hid) + 4096
    vmem_limit = int(min(64 * 1024 * 1024, max(2 * est, 16 * 1024 * 1024)))

    in_specs = [
        pl.BlockSpec((b, tile_k), lambda k: (0, k)),     # real  (native dtype)
        pl.BlockSpec((b, tile_k), lambda k: (0, k)),     # fake  (native dtype)
        pl.BlockSpec((tile_k, hid), lambda k: (k, 0)),   # W1 tile
        pl.BlockSpec((b, 1), lambda k: (0, 0)),          # eps
        pl.BlockSpec((1, hid), lambda k: (0, 0)),        # b1
        pl.BlockSpec((1, hid), lambda k: (0, 0)),        # w2^T
    ]
    out_specs = [
        pl.BlockSpec((1, 2), lambda k: (0, 0)),          # [loss_c+gp, loss_c]
        pl.BlockSpec((1, b), lambda k: (0, 0)),          # gradient norms (lane-dense)
    ]
    out_shape = (
        jax.ShapeDtypeStruct((1, 2), jnp.float32),
        jax.ShapeDtypeStruct((1, b), jnp.float32),
    )

    if num_k == 1:
        kernel = functools.partial(_single_step_kernel, bsz=b)
        scratch = []
    else:
        kernel = functools.partial(_multi_step_kernel, bsz=b)
        scratch = [pltpu.VMEM((b, hid), jnp.float32),    # h_real accumulator
                   pltpu.VMEM((b, hid), jnp.float32),    # h_fake accumulator
                   pltpu.VMEM((hid, hid), jnp.float32)]  # Gram accumulator

    # TODO(synk): v7x (2 TensorCores) — add a leading "parallel" grid axis over
    # batch-row blocks (per-block partial sums + tiny epilogue) once real GAN
    # batch sizes make a single TC the DMA-issue bottleneck; at these shapes
    # one core already saturates the shared HBM roofline.
    scalars, gnorm = pl.pallas_call(
        kernel,
        out_shape=out_shape,
        grid_spec=pltpu.PrefetchScalarGridSpec(
            num_scalar_prefetch=0,
            grid=(num_k,),
            in_specs=in_specs,
            out_specs=out_specs,
            scratch_shapes=scratch,
        ),
        compiler_params=pltpu.CompilerParams(
            dimension_semantics=("arbitrary",),
            vmem_limit_bytes=vmem_limit),
    )(real, fake, w1k, eps2, b1r, w2t)

    return scalars[0, 0], gnorm[0, :], scalars[0, 1]


def _reference(real_nchw, fake_nchw, eps, w1, b1, w2, b2):
    """Pure-JAX reference using autodiff (mirrors the PyTorch semantics)."""
    b = real_nchw.shape[0]
    real = real_nchw.reshape(b, -1)
    fake = fake_nchw.reshape(b, -1)

    def critic_single(x_row):
        h = jnp.tanh(x_row @ w1 + b1)
        return (h @ w2 + b2)[0]

    def critic(x):
        return jax.vmap(critic_single)(x)

    x_i = eps.reshape(b, 1) * real + (1.0 - eps.reshape(b, 1)) * fake
    grads = jax.vmap(jax.grad(critic_single))(x_i)
    gnorm = jnp.linalg.norm(grads, axis=1)
    gp = jnp.mean((gnorm - 1.0) ** 2) * LAMBDA_GP
    loss_c = -jnp.mean(critic(real)) + jnp.mean(critic(fake))
    return loss_c + gp, gnorm, loss_c


if __name__ == "__main__":
    B, C, H, W = 2, 4, 16, 16
    D = C * H * W
    HID = 32

    key = jax.random.PRNGKey(0)
    k_r, k_f, k_e, k_w1, k_b1, k_w2, k_b2 = jax.random.split(key, 7)

    real = jax.random.normal(k_r, (B, C, H, W), dtype=jnp.float32)
    fake = jax.random.normal(k_f, (B, C, H, W), dtype=jnp.float32)
    # torch.rand(batch, 1, 1, 1) equivalent (deterministic, externalized)
    eps = jax.random.uniform(k_e, (B,), dtype=jnp.float32)

    # deterministic synthetic critic parameters (tiny MLP critic)
    w1 = jax.random.normal(k_w1, (D, HID), dtype=jnp.float32) * 0.05
    b1 = jax.random.normal(k_b1, (HID,), dtype=jnp.float32) * 0.05
    w2 = jax.random.normal(k_w2, (HID, 1), dtype=jnp.float32) * 0.1
    b2 = jax.random.normal(k_b2, (1,), dtype=jnp.float32) * 0.1

    loss, gnorm, loss_c = critic_loss(real, fake, eps, w1, b1, w2, b2)
    jax.block_until_ready((loss, gnorm, loss_c))

    ref_loss, ref_gnorm, ref_loss_c = _reference(real, fake, eps, w1, b1, w2, b2)
    assert jnp.allclose(loss, ref_loss, rtol=1e-3, atol=1e-3)
    assert jnp.allclose(gnorm, ref_gnorm, rtol=1e-3, atol=1e-3)
    assert jnp.allclose(loss_c, ref_loss_c, rtol=1e-3, atol=1e-3)

    print("KERNEL_OK")
</pallas_src>

<mosaic_0001>
module attributes {stable_mosaic.version = 11 : i64} {
  func.func @_single_step_kernel(%arg0: i32, %arg1: memref<2x1024xf32, #tpu.memory_space<vmem>>, %arg2: memref<2x1024xf32, #tpu.memory_space<vmem>>, %arg3: memref<1024x32xf32, #tpu.memory_space<vmem>>, %arg4: memref<2x1xf32, #tpu.memory_space<vmem>>, %arg5: memref<1x32xf32, #tpu.memory_space<vmem>>, %arg6: memref<1x32xf32, #tpu.memory_space<vmem>>, %arg7: memref<1x2xf32, #tpu.memory_space<vmem>>, %arg8: memref<1x2xf32, #tpu.memory_space<vmem>>) attributes {dimension_semantics = [#tpu.dimension_semantics<arbitrary>], iteration_bounds = array<i64: 1>, scalar_prefetch = 0 : i64, scratch_operands = 0 : i64, tpu.core_type = #tpu.core_type<tc>, window_params = [{transform_indices = @transform_0, window_bounds = array<i64: 2, 1024>}, {transform_indices = @transform_1, window_bounds = array<i64: 2, 1024>}, {transform_indices = @transform_2, window_bounds = array<i64: 1024, 32>}, {pipeline_mode = #tpu.pipeline_mode<synchronous>, transform_indices = @transform_3, window_bounds = array<i64: 2, 1>}, {pipeline_mode = #tpu.pipeline_mode<synchronous>, transform_indices = @transform_4, window_bounds = array<i64: 1, 32>}, {pipeline_mode = #tpu.pipeline_mode<synchronous>, transform_indices = @transform_5, window_bounds = array<i64: 1, 32>}, {pipeline_mode = #tpu.pipeline_mode<synchronous>, transform_indices = @transform_6, window_bounds = array<i64: 1, 2>}, {pipeline_mode = #tpu.pipeline_mode<synchronous>, transform_indices = @transform_7, window_bounds = array<i64: 1, 2>}]} {
    %c0 = arith.constant 0 : index
    %c0_0 = arith.constant 0 : index
    %0 = vector.load %arg3[%c0, %c0_0] : memref<1024x32xf32, #tpu.memory_space<vmem>>, vector<1024x32xf32>
    %c0_1 = arith.constant 0 : index
    %c0_2 = arith.constant 0 : index
    %1 = vector.load %arg1[%c0_1, %c0_2] : memref<2x1024xf32, #tpu.memory_space<vmem>>, vector<2x1024xf32>
    %cst = arith.constant dense<0.000000e+00> : vector<2x32xf32>
    %2 = tpu.matmul %1, %0, %cst {dimension_numbers = #tpu.dot_dimension_numbers<[1], [0], [0], [1], [0, 0, 1, 1], [], []>} : vector<2x1024xf32>, vector<1024x32xf32>, vector<2x32xf32> -> vector<2x32xf32>
    %c0_3 = arith.constant 0 : index
    %c0_4 = arith.constant 0 : index
    %3 = vector.load %arg2[%c0_3, %c0_4] : memref<2x1024xf32, #tpu.memory_space<vmem>>, vector<2x1024xf32>
    %cst_5 = arith.constant dense<0.000000e+00> : vector<2x32xf32>
    %4 = tpu.matmul %3, %0, %cst_5 {dimension_numbers = #tpu.dot_dimension_numbers<[1], [0], [0], [1], [0, 0, 1, 1], [], []>} : vector<2x1024xf32>, vector<1024x32xf32>, vector<2x32xf32> -> vector<2x32xf32>
    %cst_6 = arith.constant dense<0.000000e+00> : vector<32x32xf32>
    %5 = tpu.matmul %0, %0, %cst_6 {dimension_numbers = #tpu.dot_dimension_numbers<[0], [0], [1], [1], [0, 1, 1, 1], [], []>} : vector<1024x32xf32>, vector<1024x32xf32>, vector<32x32xf32> -> vector<32x32xf32>
    %c0_7 = arith.constant 0 : index
    %c0_8 = arith.constant 0 : index
    %6 = vector.load %arg5[%c0_7, %c0_8] : memref<1x32xf32, #tpu.memory_space<vmem>>, vector<1x32xf32>
    %c0_9 = arith.constant 0 : index
    %c0_10 = arith.constant 0 : index
    %7 = vector.load %arg6[%c0_9, %c0_10] : memref<1x32xf32, #tpu.memory_space<vmem>>, vector<1x32xf32>
    %c0_11 = arith.constant 0 : index
    %c0_12 = arith.constant 0 : index
    %8 = vector.load %arg4[%c0_11, %c0_12] : memref<2x1xf32, #tpu.memory_space<vmem>>, vector<2x1xf32>
    %9 = vector.broadcast %6 : vector<1x32xf32> to vector<2x32xf32>
    %10 = arith.addf %2, %9 : vector<2x32xf32>
    %11 = math.tanh %10 : vector<2x32xf32>
    %12 = vector.broadcast %7 : vector<1x32xf32> to vector<2x32xf32>
    %13 = arith.mulf %11, %12 : vector<2x32xf32>
    %cst_13 = arith.constant dense<0.000000e+00> : vector<2xf32>
    %14 = vector.multi_reduction <add>, %13, %cst_13 [1] : vector<2x32xf32> to vector<2xf32>
    %15 = vector.shape_cast %14 : vector<2xf32> to vector<2x1xf32>
    %16 = vector.broadcast %6 : vector<1x32xf32> to vector<2x32xf32>
    %17 = arith.addf %4, %16 : vector<2x32xf32>
    %18 = math.tanh %17 : vector<2x32xf32>
    %19 = vector.broadcast %7 : vector<1x32xf32> to vector<2x32xf32>
    %20 = arith.mulf %18, %19 : vector<2x32xf32>
    %cst_14 = arith.constant dense<0.000000e+00> : vector<2xf32>
    %21 = vector.multi_reduction <add>, %20, %cst_14 [1] : vector<2x32xf32> to vector<2xf32>
    %22 = vector.shape_cast %21 : vector<2xf32> to vector<2x1xf32>
    %23 = arith.subf %22, %15 : vector<2x1xf32>
    %24 = vector.shape_cast %23 : vector<2x1xf32> to vector<1x2x1xf32>
    %cst_15 = arith.constant dense<0.000000e+00> : vector<1xf32>
    %25 = vector.multi_reduction <add>, %24, %cst_15 [1, 2] : vector<1x2x1xf32> to vector<1xf32>
    %26 = vector.shape_cast %25 : vector<1xf32> to vector<1x1x1xf32>
    %27 = vector.extract %26[0, 0, 0] : f32 from vector<1x1x1xf32>
    %cst_16 = arith.constant 2.000000e+00 : f32
    %28 = arith.divf %27, %cst_16 : f32
    %29 = vector.broadcast %8 : vector<2x1xf32> to vector<2x32xf32>
    %30 = arith.mulf %29, %2 : vector<2x32xf32>
    %cst_17 = arith.constant 1.000000e+00 : f32
    %31 = vector.broadcast %cst_17 : f32 to vector<2x1xf32>
    %32 = arith.subf %31, %8 : vector<2x1xf32>
    %33 = vector.broadcast %32 : vector<2x1xf32> to vector<2x32xf32>
    %34 = arith.mulf %33, %4 : vector<2x32xf32>
    %35 = arith.addf %30, %34 : vector<2x32xf32>
    %36 = vector.broadcast %6 : vector<1x32xf32> to vector<2x32xf32>
    %37 = arith.addf %35, %36 : vector<2x32xf32>
    %38 = math.tanh %37 : vector<2x32xf32>
    %39 = arith.mulf %38, %38 : vector<2x32xf32>
    %cst_18 = arith.constant 1.000000e+00 : f32
    %40 = vector.broadcast %cst_18 : f32 to vector<2x32xf32>
    %41 = arith.subf %40, %39 : vector<2x32xf32>
    %42 = vector.broadcast %7 : vector<1x32xf32> to vector<2x32xf32>
    %43 = arith.mulf %41, %42 : vector<2x32xf32>
    %cst_19 = arith.constant dense<0.000000e+00> : vector<2x32xf32>
    %44 = tpu.matmul %43, %5, %cst_19 {dimension_numbers = #tpu.dot_dimension_numbers<[1], [0], [0], [1], [0, 0, 1, 1], [], []>} : vector<2x32xf32>, vector<32x32xf32>, vector<2x32xf32> -> vector<2x32xf32>
    %45 = arith.mulf %44, %43 : vector<2x32xf32>
    %cst_20 = arith.constant dense<0.000000e+00> : vector<2xf32>
    %46 = vector.multi_reduction <add>, %45, %cst_20 [1] : vector<2x32xf32> to vector<2xf32>
    %47 = vector.shape_cast %46 : vector<2xf32> to vector<2x1xf32>
    %cst_21 = arith.constant 0.000000e+00 : f32
    %48 = vector.broadcast %cst_21 : f32 to vector<2x1xf32>
    %49 = arith.maximumf %47, %48 : vector<2x1xf32>
    %50 = math.sqrt %49 : vector<2x1xf32>
    %cst_22 = arith.constant 1.000000e+00 : f32
    %51 = vector.broadcast %cst_22 : f32 to vector<2x1xf32>
    %52 = arith.subf %50, %51 : vector<2x1xf32>
    %53 = arith.mulf %52, %52 : vector<2x1xf32>
    %54 = vector.shape_cast %53 : vector<2x1xf32> to vector<1x2x1xf32>
    %cst_23 = arith.constant dense<0.000000e+00> : vector<1xf32>
    %55 = vector.multi_reduction <add>, %54, %cst_23 [1, 2] : vector<1x2x1xf32> to vector<1xf32>
    %56 = vector.shape_cast %55 : vector<1xf32> to vector<1x1x1xf32>
    %57 = vector.extract %56[0, 0, 0] : f32 from vector<1x1x1xf32>
    %cst_24 = arith.constant 2.000000e+00 : f32
    %58 = arith.divf %57, %cst_24 : f32
    %cst_25 = arith.constant 3.000000e+01 : f32
    %59 = arith.mulf %58, %cst_25 : f32
    %60 = tpu.iota {dimensions = array<i32: 0>} : vector<2x2xi32>
    %61 = tpu.iota {dimensions = array<i32: 1>} : vector<2x2xi32>
    %62 = arith.cmpi eq, %60, %61 : vector<2x2xi32>
    %cst_26 = arith.constant 0.000000e+00 : f32
    %63 = vector.shape_cast %50 : vector<2x1xf32> to vector<2x1xf32>
    %64 = vector.broadcast %63 : vector<2x1xf32> to vector<2x2xf32>
    %65 = vector.broadcast %cst_26 : f32 to vector<2x2xf32>
    %66 = arith.select %62, %64, %65 : vector<2x2xi1>, vector<2x2xf32>
    %cst_27 = arith.constant dense<0.000000e+00> : vector<2xf32>
    %67 = vector.multi_reduction <add>, %66, %cst_27 [0] : vector<2x2xf32> to vector<2xf32>
    %68 = vector.shape_cast %67 : vector<2xf32> to vector<1x2xf32>
    %c0_28 = arith.constant 0 : index
    %c0_29 = arith.constant 0 : index
    %69 = vector.load %arg8[%c0_28, %c0_29] : memref<1x2xf32, #tpu.memory_space<vmem>>, vector<1x2xf32>
    tpu.vector_store %arg8[%c0_28, %c0_29], %68 {strides = array<i32>} : memref<1x2xf32, #tpu.memory_space<vmem>>, vector<1x2xf32>,
    %70 = tpu.iota {dimensions = array<i32: 1>} : vector<1x2xi32>
    %c0_i32 = arith.constant 0 : i32
    %71 = vector.broadcast %c0_i32 : i32 to vector<1x2xi32>
    %72 = arith.cmpi eq, %70, %71 : vector<1x2xi32>
    %73 = arith.addf %28, %59 : f32
    %74 = vector.broadcast %73 : f32 to vector<1x2xf32>
    %75 = vector.broadcast %28 : f32 to vector<1x2xf32>
    %76 = arith.select %72, %74, %75 : vector<1x2xi1>, vector<1x2xf32>
    %c0_30 = arith.constant 0 : index
    %c0_31 = arith.constant 0 : index
    %77 = vector.load %arg7[%c0_30, %c0_31] : memref<1x2xf32, #tpu.memory_space<vmem>>, vector<1x2xf32>
    tpu.vector_store %arg7[%c0_30, %c0_31], %76 {strides = array<i32>} : memref<1x2xf32, #tpu.memory_space<vmem>>, vector<1x2xf32>,
    return
  }
  func.func @transform_0(%arg0: i32) -> (i32, i32) {
    %c0_i32 = arith.constant 0 : i32
    %c0_i32_0 = arith.constant 0 : i32
    return %c0_i32, %arg0 : i32, i32
  }
  func.func @transform_1(%arg0: i32) -> (i32, i32) {
    %c0_i32 = arith.constant 0 : i32
    %c0_i32_0 = arith.constant 0 : i32
    return %c0_i32, %arg0 : i32, i32
  }
  func.func @transform_2(%arg0: i32) -> (i32, i32) {
    %c0_i32 = arith.constant 0 : i32
    %c0_i32_0 = arith.constant 0 : i32
    return %arg0, %c0_i32 : i32, i32
  }
  func.func @transform_3(%arg0: i32) -> (i32, i32) {
    %c0_i32 = arith.constant 0 : i32
    %c0_i32_0 = arith.constant 0 : i32
    %c0_i32_1 = arith.constant 0 : i32
    return %c0_i32, %c0_i32_0 : i32, i32
  }
  func.func @transform_4(%arg0: i32) -> (i32, i32) {
    %c0_i32 = arith.constant 0 : i32
    %c0_i32_0 = arith.constant 0 : i32
    %c0_i32_1 = arith.constant 0 : i32
    return %c0_i32, %c0_i32_0 : i32, i32
  }
  func.func @transform_5(%arg0: i32) -> (i32, i32) {
    %c0_i32 = arith.constant 0 : i32
    %c0_i32_0 = arith.constant 0 : i32
    %c0_i32_1 = arith.constant 0 : i32
    return %c0_i32, %c0_i32_0 : i32, i32
  }
  func.func @transform_6(%arg0: i32) -> (i32, i32) {
    %c0_i32 = arith.constant 0 : i32
    %c0_i32_0 = arith.constant 0 : i32
    %c0_i32_1 = arith.constant 0 : i32
    return %c0_i32, %c0_i32_0 : i32, i32
  }
  func.func @transform_7(%arg0: i32) -> (i32, i32) {
    %c0_i32 = arith.constant 0 : i32
    %c0_i32_0 = arith.constant 0 : i32
    %c0_i32_1 = arith.constant 0 : i32
    return %c0_i32, %c0_i32_0 : i32, i32
  }
}

</mosaic_0001>

<llo_original>
// kernel: critic_loss.1
$region0: #{critic_loss.1}
  #allocation0 [shape = 'u32[]', space=smem, size = 0x4, offset = 0x4, fixed_abs, tag = 'smem constant byte address 0x4 - core index']
  #allocation1 [shape = 'u32[144,128]{1,0:T(1,128)}', space=vmem, size = 0x12000, scoped, tag = 'internal scratch']
  %s0 = inlined_call_operand.vmem [shape: f32[2,1024], index: 0, kind: input, shape index: {}]
  %s1 = inlined_call_operand.vmem [shape: f32[2,1024], index: 1, kind: input, shape index: {}]
  %s2 = inlined_call_operand.vmem [shape: f32[1024,32], index: 2, kind: input, shape index: {}]
  %s3 = inlined_call_operand.vmem [shape: f32[2,1], index: 3, kind: input, shape index: {}]
  %s4 = inlined_call_operand.vmem [shape: f32[1,32], index: 4, kind: input, shape index: {}]
  %s5 = inlined_call_operand.vmem [shape: f32[1,32], index: 5, kind: input, shape index: {}]
  %s6 = inlined_call_operand.vmem [shape: f32[1,2], index: 6, kind: output, shape index: {0}]
  %s7 = inlined_call_operand.hbm [shape: f32[1,2], index: 7, kind: output, shape index: {1}]
  %8 = xla_tuple %s6, %s7
  %s9 = sld [smem:[#allocation0]]
  $region42: #{critic_loss.1} parent=0
    _
  %s11 = ssub.s32 1, %s9
  %s12 = scalar_select 0, %s11, %s9
  $region1: #{critic_loss.1} parent=0
    #allocation2 [shape = 'u8[512]{0}', space=vmem, size = 0x400, scoped, tag = 'output window, operand 1, single buffered']
    #allocation3 [shape = 's32[1]{0}', space=sflag, size = 0x4, scoped, tag = 'scoped memory for critic_loss.1']
    %13 = vsyncpa [#allocation3], 0
    // Predicated region
    $region2: #{critic_loss.1} parent=1 // pred_check
      _
    $region3: #{critic_loss.1} parent=1 // pred_check_branch
      %15 = sbr.rel (0) target = $region5
    $region4: #{critic_loss.1} parent=1 // pred_region
      _
    $region5: #{critic_loss.1} parent=1 // pred_fallthru
      _
    // Predicated region
    $region6: #{critic_loss.1} parent=1 // pred_check
      _
    $region7: #{critic_loss.1} parent=1 // pred_check_branch
      %17 = sbr.rel (0) target = $region9
    $region8: #{critic_loss.1} parent=1 // pred_region
      _
    $region9: #{critic_loss.1} parent=1 // pred_fallthru
      _
    // Predicated region
    $region10: #{critic_loss.1} parent=1 // pred_check
      _
    $region11: #{critic_loss.1} parent=1 // pred_check_branch
      %19 = sbr.rel (0) target = $region13
    $region12: #{critic_loss.1} parent=1 // pred_region
      _
    $region13: #{critic_loss.1} parent=1 // pred_fallthru
      _
    // Predicated region
    $region14: #{critic_loss.1} parent=1 // pred_check
      _
    $region15: #{critic_loss.1} parent=1 // pred_check_branch
      %21 = sbr.rel (0) target = $region17
    $region16: #{critic_loss.1} parent=1 // pred_region
      _
    $region17: #{critic_loss.1} parent=1 // pred_fallthru
      _
    // Predicated region
    $region18: #{critic_loss.1} parent=1 // pred_check
      _
    $region19: #{critic_loss.1} parent=1 // pred_check_branch
      %23 = sbr.rel (0) target = $region21
    $region20: #{critic_loss.1} parent=1 // pred_region
      _
    $region21: #{critic_loss.1} parent=1 // pred_fallthru
      _
    // Predicated region
    $region22: #{critic_loss.1} parent=1 // pred_check
      _
    $region23: #{critic_loss.1} parent=1 // pred_check_branch
      %25 = sbr.rel (0) target = $region25
    $region24: #{critic_loss.1} parent=1 // pred_region
      _
    $region25: #{critic_loss.1} parent=1 // pred_fallthru
      _
    %v26 = vld [vmem:[%s2] sm:$0xff]
    %v27 = vld [vmem:[%s2 + $0x8] sm:$0xff]
    %v28 = vld [vmem:[%s2 + $0x10] sm:$0xff]
    %v29 = vld [vmem:[%s2 + $0x18] sm:$0xff]
    %v30 = vld [vmem:[%s2 + $0x20] sm:$0xff]
    %v31 = vld [vmem:[%s2 + $0x28] sm:$0xff]
    %v32 = vld [vmem:[%s2 + $0x30] sm:$0xff]
    %v33 = vld [vmem:[%s2 + $0x38] sm:$0xff]
    %v34 = vld [vmem:[%s2 + $0x40] sm:$0xff]
    %v35 = vld [vmem:[%s2 + $0x48] sm:$0xff]
    %v36 = vld [vmem:[%s2 + $0x50] sm:$0xff]
    %v37 = vld [vmem:[%s2 + $0x58] sm:$0xff]
    %v38 = vld [vmem:[%s2 + $0x60] sm:$0xff]
    %v39 = vld [vmem:[%s2 + $0x68] sm:$0xff]
    %v40 = vld [vmem:[%s2 + $0x70] sm:$0xff]
    %v41 = vld [vmem:[%s2 + $0x78] sm:$0xff]
    %v42 = vld [vmem:[%s2 + $0x80] sm:$0xff]
    %v43 = vld [vmem:[%s2 + $0x88] sm:$0xff]
    %v44 = vld [vmem:[%s2 + $0x90] sm:$0xff]
    %v45 = vld [vmem:[%s2 + $0x98] sm:$0xff]
    %v46 = vld [vmem:[%s2 + $0xa0] sm:$0xff]
    %v47 = vld [vmem:[%s2 + $0xa8] sm:$0xff]
    %v48 = vld [vmem:[%s2 + $0xb0] sm:$0xff]
    %v49 = vld [vmem:[%s2 + $0xb8] sm:$0xff]
    %v50 = vld [vmem:[%s2 + $0xc0] sm:$0xff]
    %v51 = vld [vmem:[%s2 + $0xc8] sm:$0xff]
    %v52 = vld [vmem:[%s2 + $0xd0] sm:$0xff]
    %v53 = vld [vmem:[%s2 + $0xd8] sm:$0xff]
    %v54 = vld [vmem:[%s2 + $0xe0] sm:$0xff]
    %v55 = vld [vmem:[%s2 + $0xe8] sm:$0xff]
    %v56 = vld [vmem:[%s2 + $0xf0] sm:$0xff]
    %v57 = vld [vmem:[%s2 + $0xf8] sm:$0xff]
    %v58 = vld [vmem:[%s2 + $0x100] sm:$0xff]
    %v59 = vld [vmem:[%s2 + $0x108] sm:$0xff]
    %v60 = vld [vmem:[%s2 + $0x110] sm:$0xff]
    %v61 = vld [vmem:[%s2 + $0x118] sm:$0xff]
    %v62 = vld [vmem:[%s2 + $0x120] sm:$0xff]
    %v63 = vld [vmem:[%s2 + $0x128] sm:$0xff]
    %v64 = vld [vmem:[%s2 + $0x130] sm:$0xff]
    %v65 = vld [vmem:[%s2 + $0x138] sm:$0xff]
    %v66 = vld [vmem:[%s2 + $0x140] sm:$0xff]
    %v67 = vld [vmem:[%s2 + $0x148] sm:$0xff]
    %v68 = vld [vmem:[%s2 + $0x150] sm:$0xff]
    %v69 = vld [vmem:[%s2 + $0x158] sm:$0xff]
    %v70 = vld [vmem:[%s2 + $0x160] sm:$0xff]
    %v71 = vld [vmem:[%s2 + $0x168] sm:$0xff]
    %v72 = vld [vmem:[%s2 + $0x170] sm:$0xff]
    %v73 = vld [vmem:[%s2 + $0x178] sm:$0xff]
    %v74 = vld [vmem:[%s2 + $0x180] sm:$0xff]
    %v75 = vld [vmem:[%s2 + $0x188] sm:$0xff]
    %v76 = vld [vmem:[%s2 + $0x190] sm:$0xff]
    %v77 = vld [vmem:[%s2 + $0x198] sm:$0xff]
    %v78 = vld [vmem:[%s2 + $0x1a0] sm:$0xff]
    %v79 = vld [vmem:[%s2 + $0x1a8] sm:$0xff]
    %v80 = vld [vmem:[%s2 + $0x1b0] sm:$0xff]
    %v81 = vld [vmem:[%s2 + $0x1b8] sm:$0xff]
    %v82 = vld [vmem:[%s2 + $0x1c0] sm:$0xff]
    %v83 = vld [vmem:[%s2 + $0x1c8] sm:$0xff]
    %v84 = vld [vmem:[%s2 + $0x1d0] sm:$0xff]
    %v85 = vld [vmem:[%s2 + $0x1d8] sm:$0xff]
    %v86 = vld [vmem:[%s2 + $0x1e0] sm:$0xff]
    %v87 = vld [vmem:[%s2 + $0x1e8] sm:$0xff]
    %v88 = vld [vmem:[%s2 + $0x1f0] sm:$0xff]
    %v89 = vld [vmem:[%s2 + $0x1f8] sm:$0xff]
    %v90 = vld [vmem:[%s2 + $0x200] sm:$0xff]
    %v91 = vld [vmem:[%s2 + $0x208] sm:$0xff]
    %v92 = vld [vmem:[%s2 + $0x210] sm:$0xff]
    %v93 = vld [vmem:[%s2 + $0x218] sm:$0xff]
    %v94 = vld [vmem:[%s2 + $0x220] sm:$0xff]
    %v95 = vld [vmem:[%s2 + $0x228] sm:$0xff]
    %v96 = vld [vmem:[%s2 + $0x230] sm:$0xff]
    %v97 = vld [vmem:[%s2 + $0x238] sm:$0xff]
    %v98 = vld [vmem:[%s2 + $0x240] sm:$0xff]
    %v99 = vld [vmem:[%s2 + $0x248] sm:$0xff]
    %v100 = vld [vmem:[%s2 + $0x250] sm:$0xff]
    %v101 = vld [vmem:[%s2 + $0x258] sm:$0xff]
    %v102 = vld [vmem:[%s2 + $0x260] sm:$0xff]
    %v103 = vld [vmem:[%s2 + $0x268] sm:$0xff]
    %v104 = vld [vmem:[%s2 + $0x270] sm:$0xff]
    %v105 = vld [vmem:[%s2 + $0x278] sm:$0xff]
    %v106 = vld [vmem:[%s2 + $0x280] sm:$0xff]
    %v107 = vld [vmem:[%s2 + $0x288] sm:$0xff]
    %v108 = vld [vmem:[%s2 + $0x290] sm:$0xff]
    %v109 = vld [vmem:[%s2 + $0x298] sm:$0xff]
    %v110 = vld [vmem:[%s2 + $0x2a0] sm:$0xff]
    %v111 = vld [vmem:[%s2 + $0x2a8] sm:$0xff]
    %v112 = vld [vmem:[%s2 + $0x2b0] sm:$0xff]
    %v113 = vld [vmem:[%s2 + $0x2b8] sm:$0xff]
    %v114 = vld [vmem:[%s2 + $0x2c0] sm:$0xff]
    %v115 = vld [vmem:[%s2 + $0x2c8] sm:$0xff]
    %v116 = vld [vmem:[%s2 + $0x2d0] sm:$0xff]
    %v117 = vld [vmem:[%s2 + $0x2d8] sm:$0xff]
    %v118 = vld [vmem:[%s2 + $0x2e0] sm:$0xff]
    %v119 = vld [vmem:[%s2 + $0x2e8] sm:$0xff]
    %v120 = vld [vmem:[%s2 + $0x2f0] sm:$0xff]
    %v121 = vld [vmem:[%s2 + $0x2f8] sm:$0xff]
    %v122 = vld [vmem:[%s2 + $0x300] sm:$0xff]
    %v123 = vld [vmem:[%s2 + $0x308] sm:$0xff]
    %v124 = vld [vmem:[%s2 + $0x310] sm:$0xff]
    %v125 = vld [vmem:[%s2 + $0x318] sm:$0xff]
    %v126 = vld [vmem:[%s2 + $0x320] sm:$0xff]
    %v127 = vld [vmem:[%s2 + $0x328] sm:$0xff]
    %v128 = vld [vmem:[%s2 + $0x330] sm:$0xff]
    %v129 = vld [vmem:[%s2 + $0x338] sm:$0xff]
    %v130 = vld [vmem:[%s2 + $0x340] sm:$0xff]
    %v131 = vld [vmem:[%s2 + $0x348] sm:$0xff]
    %v132 = vld [vmem:[%s2 + $0x350] sm:$0xff]
    %v133 = vld [vmem:[%s2 + $0x358] sm:$0xff]
    %v134 = vld [vmem:[%s2 + $0x360] sm:$0xff]
    %v135 = vld [vmem:[%s2 + $0x368] sm:$0xff]
    %v136 = vld [vmem:[%s2 + $0x370] sm:$0xff]
    %v137 = vld [vmem:[%s2 + $0x378] sm:$0xff]
    %v138 = vld [vmem:[%s2 + $0x380] sm:$0xff]
    %v139 = vld [vmem:[%s2 + $0x388] sm:$0xff]
    %v140 = vld [vmem:[%s2 + $0x390] sm:$0xff]
    %v141 = vld [vmem:[%s2 + $0x398] sm:$0xff]
    %v142 = vld [vmem:[%s2 + $0x3a0] sm:$0xff]
    %v143 = vld [vmem:[%s2 + $0x3a8] sm:$0xff]
    %v144 = vld [vmem:[%s2 + $0x3b0] sm:$0xff]
    %v145 = vld [vmem:[%s2 + $0x3b8] sm:$0xff]
    %v146 = vld [vmem:[%s2 + $0x3c0] sm:$0xff]
    %v147 = vld [vmem:[%s2 + $0x3c8] sm:$0xff]
    %v148 = vld [vmem:[%s2 + $0x3d0] sm:$0xff]
    %v149 = vld [vmem:[%s2 + $0x3d8] sm:$0xff]
    %v150 = vld [vmem:[%s2 + $0x3e0] sm:$0xff]
    %v151 = vld [vmem:[%s2 + $0x3e8] sm:$0xff]
    %v152 = vld [vmem:[%s2 + $0x3f0] sm:$0xff]
    %v153 = vld [vmem:[%s2 + $0x3f8] sm:$0xff]
    %v154 = vld [vmem:[%s0] sm:$0xff]
    %v155 = vld [vmem:[%s0 + $0x8] sm:$0xff]
    %v158 = vcombine.high %v154, %v154
    %v160 = vunpack.c.l.s4 1983009808
    %v161 = vunpack.c.0.s8 %v160
    %v162 = vlaneseq
    %v163 = vshrl.u32 %v162, 7
    %v164 = vsub.s32 %v161, %v163
    %v165 = vrot.slane %v154, %v164
    %v167 = vunpack.c.l.s4 1983009808
    %v168 = vunpack.c.0.s8 %v167
    %v169 = vlaneseq
    %v170 = vshrl.u32 %v169, 7
    %v171 = vsub.s32 %v168, %v170
    %v172 = vrot.slane %v158, %v171
    %v173 = vcombine.high %v165, %v165
    %v174 = vcombine.high %v172, %v172
    %v175 = vcombine.high %v155, %v155
    %v177 = vunpack.c.l.s4 1983009808
    %v178 = vunpack.c.0.s8 %v177
    %v179 = vlaneseq
    %v180 = vshrl.u32 %v179, 7
    %v181 = vsub.s32 %v178, %v180
    %v182 = vrot.slane %v155, %v181
    %v184 = vunpack.c.l.s4 1983009808
    %v185 = vunpack.c.0.s8 %v184
    %v186 = vlaneseq
    %v187 = vshrl.u32 %v186, 7
    %v188 = vsub.s32 %v185, %v187
    %v189 = vrot.slane %v175, %v188
    %v190 = vcombine.high %v182, %v182
    %v191 = vcombine.high %v189, %v189
    %200 = vmatprep.subr.mxu0 0.0
    %201 = vmatpush1.msra.mxu0 %v26
    %202 = vmatprep.subr.mxu0 0.0
    %203 = vmatpush1.msra.mxu0 %v27
    %204 = vmatprep.subr.mxu0 0.0
    %205 = vmatpush1.msra.mxu0 %v28
    %206 = vmatprep.subr.mxu0 0.0
    %207 = vmatpush1.msra.mxu0 %v29
    %208 = vmatprep.subr.mxu0 0.0
    %209 = vmatpush1.msra.mxu0 %v30
    %210 = vmatprep.subr.mxu0 0.0
    %211 = vmatpush1.msra.mxu0 %v31
    %212 = vmatprep.subr.mxu0 0.0
    %213 = vmatpush1.msra.mxu0 %v32
    %214 = vmatprep.subr.mxu0 0.0
    %215 = vmatpush1.msra.mxu0 %v33
    %216 = vmatprep.subr.mxu0 0.0
    %217 = vmatpush1.msra.mxu0 %v34
    %218 = vmatprep.subr.mxu0 0.0
    %219 = vmatpush1.msra.mxu0 %v35
    %220 = vmatprep.subr.mxu0 0.0
    %221 = vmatpush1.msra.mxu0 %v36
    %222 = vmatprep.subr.mxu0 0.0
    %223 = vmatpush1.msra.mxu0 %v37
    %224 = vmatprep.subr.mxu0 0.0
    %225 = vmatpush1.msra.mxu0 %v38
    %226 = vmatprep.subr.mxu0 0.0
    %227 = vmatpush1.msra.mxu0 %v39
    %228 = vmatprep.subr.mxu0 0.0
    %229 = vmatpush1.msra.mxu0 %v40
    %230 = vmatprep.subr.mxu0 0.0
    %231 = vmatpush1.msra.mxu0 %v41
    %232 = vmatprep.subr.mxu0 0.0
    %233 = vmatpush1.msra.mxu0 %v42
    %234 = vmatprep.subr.mxu0 0.0
    %235 = vmatpush1.msra.mxu0 %v43
    %236 = vmatprep.subr.mxu0 0.0
    %237 = vmatpush1.msra.mxu0 %v44
    %238 = vmatprep.subr.mxu0 0.0
    %239 = vmatpush1.msra.mxu0 %v45
    %240 = vmatprep.subr.mxu0 0.0
    %241 = vmatpush1.msra.mxu0 %v46
    %242 = vmatprep.subr.mxu0 0.0
    %243 = vmatpush1.msra.mxu0 %v47
    %244 = vmatprep.subr.mxu0 0.0
    %245 = vmatpush1.msra.mxu0 %v48
    %246 = vmatprep.subr.mxu0 0.0
    %247 = vmatpush1.msra.mxu0 %v49
    %248 = vmatprep.subr.mxu0 0.0
    %249 = vmatpush1.msra.mxu0 %v50
    %250 = vmatprep.subr.mxu0 0.0
    %251 = vmatpush1.msra.mxu0 %v51
    %252 = vmatprep.subr.mxu0 0.0
    %253 = vmatpush1.msra.mxu0 %v52
    %254 = vmatprep.subr.mxu0 0.0
    %255 = vmatpush1.msra.mxu0 %v53
    %256 = vmatprep.subr.mxu0 0.0
    %257 = vmatpush1.msra.mxu0 %v54
    %258 = vmatprep.subr.mxu0 0.0
    %259 = vmatpush1.msra.mxu0 %v55
    %260 = vmatprep.subr.mxu0 0.0
    %261 = vmatpush1.msra.mxu0 %v56
    %262 = vmatprep.subr.mxu0 0.0
    %263 = vmatpush1.msra.mxu0 %v57
    %264 = vmatprep.mubr.f32.mxu0 %v173
    %265 = vmatmul.mubr.f32.gmra.mrb[0].mxu0 %v165
    %v266 = vpop.f32.mrb[0].mxu0
    %v267 = vadd.f32 0.0, %v266
    %v268 = vpop.f32.mrb[0].mxu0
    %269 = vdwg.mxu0
    %270 = vmatprep.subr.mxu0 0.0
    %271 = vmatpush1.msra.mxu0 %v58
    %272 = vmatprep.subr.mxu0 0.0
    %273 = vmatpush1.msra.mxu0 %v59
    %274 = vmatprep.subr.mxu0 0.0
    %275 = vmatpush1.msra.mxu0 %v60
    %276 = vmatprep.subr.mxu0 0.0
    %277 = vmatpush1.msra.mxu0 %v61
    %278 = vmatprep.subr.mxu0 0.0
    %279 = vmatpush1.msra.mxu0 %v62
    %280 = vmatprep.subr.mxu0 0.0
    %281 = vmatpush1.msra.mxu0 %v63
    %282 = vmatprep.subr.mxu0 0.0
    %283 = vmatpush1.msra.mxu0 %v64
    %284 = vmatprep.subr.mxu0 0.0
    %285 = vmatpush1.msra.mxu0 %v65
    %286 = vmatprep.subr.mxu0 0.0
    %287 = vmatpush1.msra.mxu0 %v66
    %288 = vmatprep.subr.mxu0 0.0
    %289 = vmatpush1.msra.mxu0 %v67
    %290 = vmatprep.subr.mxu0 0.0
    %291 = vmatpush1.msra.mxu0 %v68
    %292 = vmatprep.subr.mxu0 0.0
    %293 = vmatpush1.msra.mxu0 %v69
    %294 = vmatprep.subr.mxu0 0.0
    %295 = vmatpush1.msra.mxu0 %v70
    %296 = vmatprep.subr.mxu0 0.0
    %297 = vmatpush1.msra.mxu0 %v71
    %298 = vmatprep.subr.mxu0 0.0
    %299 = vmatpush1.msra.mxu0 %v72
    %300 = vmatprep.subr.mxu0 0.0
    %301 = vmatpush1.msra.mxu0 %v73
    %302 = vmatprep.subr.mxu0 0.0
    %303 = vmatpush1.msra.mxu0 %v74
    %304 = vmatprep.subr.mxu0 0.0
    %305 = vmatpush1.msra.mxu0 %v75
    %306 = vmatprep.subr.mxu0 0.0
    %307 = vmatpush1.msra.mxu0 %v76
    %308 = vmatprep.subr.mxu0 0.0
    %309 = vmatpush1.msra.mxu0 %v77
    %310 = vmatprep.subr.mxu0 0.0
    %311 = vmatpush1.msra.mxu0 %v78
    %312 = vmatprep.subr.mxu0 0.0
    %313 = vmatpush1.msra.mxu0 %v79
    %314 = vmatprep.subr.mxu0 0.0
    %315 = vmatpush1.msra.mxu0 %v80
    %316 = vmatprep.subr.mxu0 0.0
    %317 = vmatpush1.msra.mxu0 %v81
    %318 = vmatprep.subr.mxu0 0.0
    %319 = vmatpush1.msra.mxu0 %v82
    %320 = vmatprep.subr.mxu0 0.0
    %321 = vmatpush1.msra.mxu0 %v83
    %322 = vmatprep.subr.mxu0 0.0
    %323 = vmatpush1.msra.mxu0 %v84
    %324 = vmatprep.subr.mxu0 0.0
    %325 = vmatpush1.msra.mxu0 %v85
    %326 = vmatprep.subr.mxu0 0.0
    %327 = vmatpush1.msra.mxu0 %v86
    %328 = vmatprep.subr.mxu0 0.0
    %329 = vmatpush1.msra.mxu0 %v87
    %330 = vmatprep.subr.mxu0 0.0
    %331 = vmatpush1.msra.mxu0 %v88
    %332 = vmatprep.subr.mxu0 0.0
    %333 = vmatpush1.msra.mxu0 %v89
    %334 = vmatprep.mubr.f32.mxu0 %v174
    %335 = vmatmul.mubr.f32.gmra.mrb[0].mxu0 %v172
    %v336 = vpop.f32.mrb[0].mxu0
    %v337 = vadd.f32 %v267, %v336
    %v338 = vpop.f32.mrb[0].mxu0
    %339 = vdwg.mxu0
    %340 = vmatprep.subr.mxu0 0.0
    %341 = vmatpush1.msra.mxu0 %v90
    %342 = vmatprep.subr.mxu0 0.0
    %343 = vmatpush1.msra.mxu0 %v91
    %344 = vmatprep.subr.mxu0 0.0
    %345 = vmatpush1.msra.mxu0 %v92
    %346 = vmatprep.subr.mxu0 0.0
    %347 = vmatpush1.msra.mxu0 %v93
    %348 = vmatprep.subr.mxu0 0.0
    %349 = vmatpush1.msra.mxu0 %v94
    %350 = vmatprep.subr.mxu0 0.0
    %351 = vmatpush1.msra.mxu0 %v95
    %352 = vmatprep.subr.mxu0 0.0
    %353 = vmatpush1.msra.mxu0 %v96
    %354 = vmatprep.subr.mxu0 0.0
    %355 = vmatpush1.msra.mxu0 %v97
    %356 = vmatprep.subr.mxu0 0.0
    %357 = vmatpush1.msra.mxu0 %v98
    %358 = vmatprep.subr.mxu0 0.0
    %359 = vmatpush1.msra.mxu0 %v99
    %360 = vmatprep.subr.mxu0 0.0
    %361 = vmatpush1.msra.mxu0 %v100
    %362 = vmatprep.subr.mxu0 0.0
    %363 = vmatpush1.msra.mxu0 %v101
    %364 = vmatprep.subr.mxu0 0.0
    %365 = vmatpush1.msra.mxu0 %v102
    %366 = vmatprep.subr.mxu0 0.0
    %367 = vmatpush1.msra.mxu0 %v103
    %368 = vmatprep.subr.mxu0 0.0
    %369 = vmatpush1.msra.mxu0 %v104
    %370 = vmatprep.subr.mxu0 0.0
    %371 = vmatpush1.msra.mxu0 %v105
    %372 = vmatprep.subr.mxu0 0.0
    %373 = vmatpush1.msra.mxu0 %v106
    %374 = vmatprep.subr.mxu0 0.0
    %375 = vmatpush1.msra.mxu0 %v107
    %376 = vmatprep.subr.mxu0 0.0
    %377 = vmatpush1.msra.mxu0 %v108
    %378 = vmatprep.subr.mxu0 0.0
    %379 = vmatpush1.msra.mxu0 %v109
    %380 = vmatprep.subr.mxu0 0.0
    %381 = vmatpush1.msra.mxu0 %v110
    %382 = vmatprep.subr.mxu0 0.0
    %383 = vmatpush1.msra.mxu0 %v111
    %384 = vmatprep.subr.mxu0 0.0
    %385 = vmatpush1.msra.mxu0 %v112
    %386 = vmatprep.subr.mxu0 0.0
    %387 = vmatpush1.msra.mxu0 %v113
    %388 = vmatprep.subr.mxu0 0.0
    %389 = vmatpush1.msra.mxu0 %v114
    %390 = vmatprep.subr.mxu0 0.0
    %391 = vmatpush1.msra.mxu0 %v115
    %392 = vmatprep.subr.mxu0 0.0
    %393 = vmatpush1.msra.mxu0 %v116
    %394 = vmatprep.subr.mxu0 0.0
    %395 = vmatpush1.msra.mxu0 %v117
    %396 = vmatprep.subr.mxu0 0.0
    %397 = vmatpush1.msra.mxu0 %v118
    %398 = vmatprep.subr.mxu0 0.0
    %399 = vmatpush1.msra.mxu0 %v119
    %400 = vmatprep.subr.mxu0 0.0
    %401 = vmatpush1.msra.mxu0 %v120
    %402 = vmatprep.subr.mxu0 0.0
    %403 = vmatpush1.msra.mxu0 %v121
    %404 = vmatprep.mubr.f32.mxu0 %v190
    %405 = vmatmul.mubr.f32.gmra.mrb[0].mxu0 %v182
    %v406 = vpop.f32.mrb[0].mxu0
    %v407 = vadd.f32 %v337, %v406
    %v408 = vpop.f32.mrb[0].mxu0
    %409 = vdwg.mxu0
    %410 = vmatprep.subr.mxu0 0.0
    %411 = vmatpush1.msra.mxu0 %v122
    %412 = vmatprep.subr.mxu0 0.0
    %413 = vmatpush1.msra.mxu0 %v123
    %414 = vmatprep.subr.mxu0 0.0
    %415 = vmatpush1.msra.mxu0 %v124
    %416 = vmatprep.subr.mxu0 0.0
    %417 = vmatpush1.msra.mxu0 %v125
    %418 = vmatprep.subr.mxu0 0.0
    %419 = vmatpush1.msra.mxu0 %v126
    %420 = vmatprep.subr.mxu0 0.0
    %421 = vmatpush1.msra.mxu0 %v127
    %422 = vmatprep.subr.mxu0 0.0
    %423 = vmatpush1.msra.mxu0 %v128
    %424 = vmatprep.subr.mxu0 0.0
    %425 = vmatpush1.msra.mxu0 %v129
    %426 = vmatprep.subr.mxu0 0.0
    %427 = vmatpush1.msra.mxu0 %v130
    %428 = vmatprep.subr.mxu0 0.0
    %429 = vmatpush1.msra.mxu0 %v131
    %430 = vmatprep.subr.mxu0 0.0
    %431 = vmatpush1.msra.mxu0 %v132
    %432 = vmatprep.subr.mxu0 0.0
    %433 = vmatpush1.msra.mxu0 %v133
    %434 = vmatprep.subr.mxu0 0.0
    %435 = vmatpush1.msra.mxu0 %v134
    %436 = vmatprep.subr.mxu0 0.0
    %437 = vmatpush1.msra.mxu0 %v135
    %438 = vmatprep.subr.mxu0 0.0
    %439 = vmatpush1.msra.mxu0 %v136
    %440 = vmatprep.subr.mxu0 0.0
    %441 = vmatpush1.msra.mxu0 %v137
    %442 = vmatprep.subr.mxu0 0.0
    %443 = vmatpush1.msra.mxu0 %v138
    %444 = vmatprep.subr.mxu0 0.0
    %445 = vmatpush1.msra.mxu0 %v139
    %446 = vmatprep.subr.mxu0 0.0
    %447 = vmatpush1.msra.mxu0 %v140
    %448 = vmatprep.subr.mxu0 0.0
    %449 = vmatpush1.msra.mxu0 %v141
    %450 = vmatprep.subr.mxu0 0.0
    %451 = vmatpush1.msra.mxu0 %v142
    %452 = vmatprep.subr.mxu0 0.0
    %453 = vmatpush1.msra.mxu0 %v143
    %454 = vmatprep.subr.mxu0 0.0
    %455 = vmatpush1.msra.mxu0 %v144
    %456 = vmatprep.subr.mxu0 0.0
    %457 = vmatpush1.msra.mxu0 %v145
    %458 = vmatprep.subr.mxu0 0.0
    %459 = vmatpush1.msra.mxu0 %v146
    %460 = vmatprep.subr.mxu0 0.0
    %461 = vmatpush1.msra.mxu0 %v147
    %462 = vmatprep.subr.mxu0 0.0
    %463 = vmatpush1.msra.mxu0 %v148
    %464 = vmatprep.subr.mxu0 0.0
    %465 = vmatpush1.msra.mxu0 %v149
    %466 = vmatprep.subr.mxu0 0.0
    %467 = vmatpush1.msra.mxu0 %v150
    %468 = vmatprep.subr.mxu0 0.0
    %469 = vmatpush1.msra.mxu0 %v151
    %470 = vmatprep.subr.mxu0 0.0
    %471 = vmatpush1.msra.mxu0 %v152
    %472 = vmatprep.subr.mxu0 0.0
    %473 = vmatpush1.msra.mxu0 %v153
    %474 = vmatprep.mubr.f32.mxu0 %v191
    %475 = vmatmul.mubr.f32.gmra.mrb[0].mxu0 %v189
    %v476 = vpop.f32.mrb[0].mxu0
    %v477 = vadd.f32 %v407, %v476
    %v478 = vpop.f32.mrb[0].mxu0
    %479 = vdwg.mxu0
    %v480 = vld [vmem:[%s1] sm:$0xff]
    %v481 = vld [vmem:[%s1 + $0x8] sm:$0xff]
    %v484 = vcombine.high %v480, %v480
    %v486 = vunpack.c.l.s4 1983009808
    %v487 = vunpack.c.0.s8 %v486
    %v488 = vlaneseq
    %v489 = vshrl.u32 %v488, 7
    %v490 = vsub.s32 %v487, %v489
    %v491 = vrot.slane %v480, %v490
    %v493 = vunpack.c.l.s4 1983009808
    %v494 = vunpack.c.0.s8 %v493
    %v495 = vlaneseq
    %v496 = vshrl.u32 %v495, 7
    %v497 = vsub.s32 %v494, %v496
    %v498 = vrot.slane %v484, %v497
    %v499 = vcombine.high %v491, %v491
    %v500 = vcombine.high %v498, %v498
    %v501 = vcombine.high %v481, %v481
    %v503 = vunpack.c.l.s4 1983009808
    %v504 = vunpack.c.0.s8 %v503
    %v505 = vlaneseq
    %v506 = vshrl.u32 %v505, 7
    %v507 = vsub.s32 %v504, %v506
    %v508 = vrot.slane %v481, %v507
    %v510 = vunpack.c.l.s4 1983009808
    %v511 = vunpack.c.0.s8 %v510
    %v512 = vlaneseq
    %v513 = vshrl.u32 %v512, 7
    %v514 = vsub.s32 %v511, %v513
    %v515 = vrot.slane %v501, %v514
    %v516 = vcombine.high %v508, %v508
    %v517 = vcombine.high %v515, %v515
    %526 = vmatprep.subr.mxu0 0.0
    %527 = vmatpush1.msra.mxu0 %v26
    %528 = vmatprep.subr.mxu0 0.0
    %529 = vmatpush1.msra.mxu0 %v27
    %530 = vmatprep.subr.mxu0 0.0
    %531 = vmatpush1.msra.mxu0 %v28
    %532 = vmatprep.subr.mxu0 0.0
    %533 = vmatpush1.msra.mxu0 %v29
    %534 = vmatprep.subr.mxu0 0.0
    %535 = vmatpush1.msra.mxu0 %v30
    %536 = vmatprep.subr.mxu0 0.0
    %537 = vmatpush1.msra.mxu0 %v31
    %538 = vmatprep.subr.mxu0 0.0
    %539 = vmatpush1.msra.mxu0 %v32
    %540 = vmatprep.subr.mxu0 0.0
    %541 = vmatpush1.msra.mxu0 %v33
    %542 = vmatprep.subr.mxu0 0.0
    %543 = vmatpush1.msra.mxu0 %v34
    %544 = vmatprep.subr.mxu0 0.0
    %545 = vmatpush1.msra.mxu0 %v35
    %546 = vmatprep.subr.mxu0 0.0
    %547 = vmatpush1.msra.mxu0 %v36
    %548 = vmatprep.subr.mxu0 0.0
    %549 = vmatpush1.msra.mxu0 %v37
    %550 = vmatprep.subr.mxu0 0.0
    %551 = vmatpush1.msra.mxu0 %v38
    %552 = vmatprep.subr.mxu0 0.0
    %553 = vmatpush1.msra.mxu0 %v39
    %554 = vmatprep.subr.mxu0 0.0
    %555 = vmatpush1.msra.mxu0 %v40
    %556 = vmatprep.subr.mxu0 0.0
    %557 = vmatpush1.msra.mxu0 %v41
    %558 = vmatprep.subr.mxu0 0.0
    %559 = vmatpush1.msra.mxu0 %v42
    %560 = vmatprep.subr.mxu0 0.0
    %561 = vmatpush1.msra.mxu0 %v43
    %562 = vmatprep.subr.mxu0 0.0
    %563 = vmatpush1.msra.mxu0 %v44
    %564 = vmatprep.subr.mxu0 0.0
    %565 = vmatpush1.msra.mxu0 %v45
    %566 = vmatprep.subr.mxu0 0.0
    %567 = vmatpush1.msra.mxu0 %v46
    %568 = vmatprep.subr.mxu0 0.0
    %569 = vmatpush1.msra.mxu0 %v47
    %570 = vmatprep.subr.mxu0 0.0
    %571 = vmatpush1.msra.mxu0 %v48
    %572 = vmatprep.subr.mxu0 0.0
    %573 = vmatpush1.msra.mxu0 %v49
    %574 = vmatprep.subr.mxu0 0.0
    %575 = vmatpush1.msra.mxu0 %v50
    %576 = vmatprep.subr.mxu0 0.0
    %577 = vmatpush1.msra.mxu0 %v51
    %578 = vmatprep.subr.mxu0 0.0
    %579 = vmatpush1.msra.mxu0 %v52
    %580 = vmatprep.subr.mxu0 0.0
    %581 = vmatpush1.msra.mxu0 %v53
    %582 = vmatprep.subr.mxu0 0.0
    %583 = vmatpush1.msra.mxu0 %v54
    %584 = vmatprep.subr.mxu0 0.0
    %585 = vmatpush1.msra.mxu0 %v55
    %586 = vmatprep.subr.mxu0 0.0
    %587 = vmatpush1.msra.mxu0 %v56
    %588 = vmatprep.subr.mxu0 0.0
    %589 = vmatpush1.msra.mxu0 %v57
    %590 = vmatprep.mubr.f32.mxu0 %v499
    %591 = vmatmul.mubr.f32.gmra.mrb[0].mxu0 %v491
    %v592 = vpop.f32.mrb[0].mxu0
    %v593 = vadd.f32 0.0, %v592
    %v594 = vpop.f32.mrb[0].mxu0
    %595 = vdwg.mxu0
    %596 = vmatprep.subr.mxu0 0.0
    %597 = vmatpush1.msra.mxu0 %v58
    %598 = vmatprep.subr.mxu0 0.0
    %599 = vmatpush1.msra.mxu0 %v59
    %600 = vmatprep.subr.mxu0 0.0
    %601 = vmatpush1.msra.mxu0 %v60
    %602 = vmatprep.subr.mxu0 0.0
    %603 = vmatpush1.msra.mxu0 %v61
    %604 = vmatprep.subr.mxu0 0.0
    %605 = vmatpush1.msra.mxu0 %v62
    %606 = vmatprep.subr.mxu0 0.0
    %607 = vmatpush1.msra.mxu0 %v63
    %608 = vmatprep.subr.mxu0 0.0
    %609 = vmatpush1.msra.mxu0 %v64
    %610 = vmatprep.subr.mxu0 0.0
    %611 = vmatpush1.msra.mxu0 %v65
    %612 = vmatprep.subr.mxu0 0.0
    %613 = vmatpush1.msra.mxu0 %v66
    %614 = vmatprep.subr.mxu0 0.0
    %615 = vmatpush1.msra.mxu0 %v67
    %616 = vmatprep.subr.mxu0 0.0
    %617 = vmatpush1.msra.mxu0 %v68
    %618 = vmatprep.subr.mxu0 0.0
    %619 = vmatpush1.msra.mxu0 %v69
    %620 = vmatprep.subr.mxu0 0.0
    %621 = vmatpush1.msra.mxu0 %v70
    %622 = vmatprep.subr.mxu0 0.0
    %623 = vmatpush1.msra.mxu0 %v71
    %624 = vmatprep.subr.mxu0 0.0
    %625 = vmatpush1.msra.mxu0 %v72
    %626 = vmatprep.subr.mxu0 0.0
    %627 = vmatpush1.msra.mxu0 %v73
    %628 = vmatprep.subr.mxu0 0.0
    %629 = vmatpush1.msra.mxu0 %v74
    %630 = vmatprep.subr.mxu0 0.0
    %631 = vmatpush1.msra.mxu0 %v75
    %632 = vmatprep.subr.mxu0 0.0
    %633 = vmatpush1.msra.mxu0 %v76
    %634 = vmatprep.subr.mxu0 0.0
    %635 = vmatpush1.msra.mxu0 %v77
    %636 = vmatprep.subr.mxu0 0.0
    %637 = vmatpush1.msra.mxu0 %v78
    %638 = vmatprep.subr.mxu0 0.0
    %639 = vmatpush1.msra.mxu0 %v79
    %640 = vmatprep.subr.mxu0 0.0
    %641 = vmatpush1.msra.mxu0 %v80
    %642 = vmatprep.subr.mxu0 0.0
    %643 = vmatpush1.msra.mxu0 %v81
    %644 = vmatprep.subr.mxu0 0.0
    %645 = vmatpush1.msra.mxu0 %v82
    %646 = vmatprep.subr.mxu0 0.0
    %647 = vmatpush1.msra.mxu0 %v83
    %648 = vmatprep.subr.mxu0 0.0
    %649 = vmatpush1.msra.mxu0 %v84
    %650 = vmatprep.subr.mxu0 0.0
    %651 = vmatpush1.msra.mxu0 %v85
    %652 = vmatprep.subr.mxu0 0.0
    %653 = vmatpush1.msra.mxu0 %v86
    %654 = vmatprep.subr.mxu0 0.0
    %655 = vmatpush1.msra.mxu0 %v87
    %656 = vmatprep.subr.mxu0 0.0
    %657 = vmatpush1.msra.mxu0 %v88
    %658 = vmatprep.subr.mxu0 0.0
    %659 = vmatpush1.msra.mxu0 %v89
    %660 = vmatprep.mubr.f32.mxu0 %v500
    %661 = vmatmul.mubr.f32.gmra.mrb[0].mxu0 %v498
    %v662 = vpop.f32.mrb[0].mxu0
    %v663 = vadd.f32 %v593, %v662
    %v664 = vpop.f32.mrb[0].mxu0
    %665 = vdwg.mxu0
    %666 = vmatprep.subr.mxu0 0.0
    %667 = vmatpush1.msra.mxu0 %v90
    %668 = vmatprep.subr.mxu0 0.0
    %669 = vmatpush1.msra.mxu0 %v91
    %670 = vmatprep.subr.mxu0 0.0
    %671 = vmatpush1.msra.mxu0 %v92
    %672 = vmatprep.subr.mxu0 0.0
    %673 = vmatpush1.msra.mxu0 %v93
    %674 = vmatprep.subr.mxu0 0.0
    %675 = vmatpush1.msra.mxu0 %v94
    %676 = vmatprep.subr.mxu0 0.0
    %677 = vmatpush1.msra.mxu0 %v95
    %678 = vmatprep.subr.mxu0 0.0
    %679 = vmatpush1.msra.mxu0 %v96
    %680 = vmatprep.subr.mxu0 0.0
    %681 = vmatpush1.msra.mxu0 %v97
    %682 = vmatprep.subr.mxu0 0.0
    %683 = vmatpush1.msra.mxu0 %v98
    %684 = vmatprep.subr.mxu0 0.0
    %685 = vmatpush1.msra.mxu0 %v99
    %686 = vmatprep.subr.mxu0 0.0
    %687 = vmatpush1.msra.mxu0 %v100
    %688 = vmatprep.subr.mxu0 0.0
    %689 = vmatpush1.msra.mxu0 %v101
    %690 = vmatprep.subr.mxu0 0.0
    %691 = vmatpush1.msra.mxu0 %v102
    %692 = vmatprep.subr.mxu0 0.0
    %693 = vmatpush1.msra.mxu0 %v103
    %694 = vmatprep.subr.mxu0 0.0
    %695 = vmatpush1.msra.mxu0 %v104
    %696 = vmatprep.subr.mxu0 0.0
    %697 = vmatpush1.msra.mxu0 %v105
    %698 = vmatprep.subr.mxu0 0.0
    %699 = vmatpush1.msra.mxu0 %v106
    %700 = vmatprep.subr.mxu0 0.0
    %701 = vmatpush1.msra.mxu0 %v107
    %702 = vmatprep.subr.mxu0 0.0
    %703 = vmatpush1.msra.mxu0 %v108
    %704 = vmatprep.subr.mxu0 0.0
    %705 = vmatpush1.msra.mxu0 %v109
    %706 = vmatprep.subr.mxu0 0.0
    %707 = vmatpush1.msra.mxu0 %v110
    %708 = vmatprep.subr.mxu0 0.0
    %709 = vmatpush1.msra.mxu0 %v111
    %710 = vmatprep.subr.mxu0 0.0
    %711 = vmatpush1.msra.mxu0 %v112
    %712 = vmatprep.subr.mxu0 0.0
    %713 = vmatpush1.msra.mxu0 %v113
    %714 = vmatprep.subr.mxu0 0.0
    %715 = vmatpush1.msra.mxu0 %v114
    %716 = vmatprep.subr.mxu0 0.0
    %717 = vmatpush1.msra.mxu0 %v115
    %718 = vmatprep.subr.mxu0 0.0
    %719 = vmatpush1.msra.mxu0 %v116
    %720 = vmatprep.subr.mxu0 0.0
    %721 = vmatpush1.msra.mxu0 %v117
    %722 = vmatprep.subr.mxu0 0.0
    %723 = vmatpush1.msra.mxu0 %v118
    %724 = vmatprep.subr.mxu0 0.0
    %725 = vmatpush1.msra.mxu0 %v119
    %726 = vmatprep.subr.mxu0 0.0
    %727 = vmatpush1.msra.mxu0 %v120
    %728 = vmatprep.subr.mxu0 0.0
    %729 = vmatpush1.msra.mxu0 %v121
    %730 = vmatprep.mubr.f32.mxu0 %v516
    %731 = vmatmul.mubr.f32.gmra.mrb[0].mxu0 %v508
    %v732 = vpop.f32.mrb[0].mxu0
    %v733 = vadd.f32 %v663, %v732
    %v734 = vpop.f32.mrb[0].mxu0
    %735 = vdwg.mxu0
    %736 = vmatprep.subr.mxu0 0.0
    %737 = vmatpush1.msra.mxu0 %v122
    %738 = vmatprep.subr.mxu0 0.0
    %739 = vmatpush1.msra.mxu0 %v123
    %740 = vmatprep.subr.mxu0 0.0
    %741 = vmatpush1.msra.mxu0 %v124
    %742 = vmatprep.subr.mxu0 0.0
    %743 = vmatpush1.msra.mxu0 %v125
    %744 = vmatprep.subr.mxu0 0.0
    %745 = vmatpush1.msra.mxu0 %v126
    %746 = vmatprep.subr.mxu0 0.0
    %747 = vmatpush1.msra.mxu0 %v127
    %748 = vmatprep.subr.mxu0 0.0
    %749 = vmatpush1.msra.mxu0 %v128
    %750 = vmatprep.subr.mxu0 0.0
    %751 = vmatpush1.msra.mxu0 %v129
    %752 = vmatprep.subr.mxu0 0.0
    %753 = vmatpush1.msra.mxu0 %v130
    %754 = vmatprep.subr.mxu0 0.0
    %755 = vmatpush1.msra.mxu0 %v131
    %756 = vmatprep.subr.mxu0 0.0
    %757 = vmatpush1.msra.mxu0 %v132
    %758 = vmatprep.subr.mxu0 0.0
    %759 = vmatpush1.msra.mxu0 %v133
    %760 = vmatprep.subr.mxu0 0.0
    %761 = vmatpush1.msra.mxu0 %v134
    %762 = vmatprep.subr.mxu0 0.0
    %763 = vmatpush1.msra.mxu0 %v135
    %764 = vmatprep.subr.mxu0 0.0
    %765 = vmatpush1.msra.mxu0 %v136
    %766 = vmatprep.subr.mxu0 0.0
    %767 = vmatpush1.msra.mxu0 %v137
    %768 = vmatprep.subr.mxu0 0.0
    %769 = vmatpush1.msra.mxu0 %v138
    %770 = vmatprep.subr.mxu0 0.0
    %771 = vmatpush1.msra.mxu0 %v139
    %772 = vmatprep.subr.mxu0 0.0
    %773 = vmatpush1.msra.mxu0 %v140
    %774 = vmatprep.subr.mxu0 0.0
    %775 = vmatpush1.msra.mxu0 %v141
    %776 = vmatprep.subr.mxu0 0.0
    %777 = vmatpush1.msra.mxu0 %v142
    %778 = vmatprep.subr.mxu0 0.0
    %779 = vmatpush1.msra.mxu0 %v143
    %780 = vmatprep.subr.mxu0 0.0
    %781 = vmatpush1.msra.mxu0 %v144
    %782 = vmatprep.subr.mxu0 0.0
    %783 = vmatpush1.msra.mxu0 %v145
    %784 = vmatprep.subr.mxu0 0.0
    %785 = vmatpush1.msra.mxu0 %v146
    %786 = vmatprep.subr.mxu0 0.0
    %787 = vmatpush1.msra.mxu0 %v147
    %788 = vmatprep.subr.mxu0 0.0
    %789 = vmatpush1.msra.mxu0 %v148
    %790 = vmatprep.subr.mxu0 0.0
    %791 = vmatpush1.msra.mxu0 %v149
    %792 = vmatprep.subr.mxu0 0.0
    %793 = vmatpush1.msra.mxu0 %v150
    %794 = vmatprep.subr.mxu0 0.0
    %795 = vmatpush1.msra.mxu0 %v151
    %796 = vmatprep.subr.mxu0 0.0
    %797 = vmatpush1.msra.mxu0 %v152
    %798 = vmatprep.subr.mxu0 0.0
    %799 = vmatpush1.msra.mxu0 %v153
    %800 = vmatprep.mubr.f32.mxu0 %v517
    %801 = vmatmul.mubr.f32.gmra.mrb[0].mxu0 %v515
    %v802 = vpop.f32.mrb[0].mxu0
    %v803 = vadd.f32 %v733, %v802
    %v804 = vpop.f32.mrb[0].mxu0
    %805 = vdwg.mxu0
    %806 = vxpose.xlu0.b32.start [1/16] %v26, 128
    %807 = vxpose.xlu0.b32.cont [2/16] %v27, 128
    %808 = vxpose.xlu0.b32.cont [3/16] %v28, 128
    %809 = vxpose.xlu0.b32.cont [4/16] %v29, 128
    %810 = vxpose.xlu0.b32.cont [5/16] %v30, 128
    %811 = vxpose.xlu0.b32.cont [6/16] %v31, 128
    %812 = vxpose.xlu0.b32.cont [7/16] %v32, 128
    %813 = vxpose.xlu0.b32.cont [8/16] %v33, 128
    %814 = vxpose.xlu0.b32.cont [9/16] %v34, 128
    %815 = vxpose.xlu0.b32.cont [10/16] %v35, 128
    %816 = vxpose.xlu0.b32.cont [11/16] %v36, 128
    %817 = vxpose.xlu0.b32.cont [12/16] %v37, 128
    %818 = vxpose.xlu0.b32.cont [13/16] %v38, 128
    %819 = vxpose.xlu0.b32.cont [14/16] %v39, 128
    %820 = vxpose.xlu0.b32.cont [15/16] %v40, 128
    %821 = vxpose.xlu0.b32.end [16/16] %v41, 128
    %v822 = vpop.trf.xlu0
    %v823 = vpop.trf.xlu0
    %v824 = vpop.trf.xlu0
    %v825 = vpop.trf.xlu0
    %v826 = vpop.trf.xlu0
    %v827 = vpop.trf.xlu0
    %v828 = vpop.trf.xlu0
    %v829 = vpop.trf.xlu0
    %v830 = vpop.trf.xlu0
    %v831 = vpop.trf.xlu0
    %v832 = vpop.trf.xlu0
    %v833 = vpop.trf.xlu0
    %v834 = vpop.trf.xlu0
    %v835 = vpop.trf.xlu0
    %v836 = vpop.trf.xlu0
    %v837 = vpop.trf.xlu0
    %838 = vxpose.xlu0.b32.start [1/16] %v42, 128
    %839 = vxpose.xlu0.b32.cont [2/16] %v43, 128
    %840 = vxpose.xlu0.b32.cont [3/16] %v44, 128
    %841 = vxpose.xlu0.b32.cont [4/16] %v45, 128
    %842 = vxpose.xlu0.b32.cont [5/16] %v46, 128
    %843 = vxpose.xlu0.b32.cont [6/16] %v47, 128
    %844 = vxpose.xlu0.b32.cont [7/16] %v48, 128
    %845 = vxpose.xlu0.b32.cont [8/16] %v49, 128
    %846 = vxpose.xlu0.b32.cont [9/16] %v50, 128
    %847 = vxpose.xlu0.b32.cont [10/16] %v51, 128
    %848 = vxpose.xlu0.b32.cont [11/16] %v52, 128
    %849 = vxpose.xlu0.b32.cont [12/16] %v53, 128
    %850 = vxpose.xlu0.b32.cont [13/16] %v54, 128
    %851 = vxpose.xlu0.b32.cont [14/16] %v55, 128
    %852 = vxpose.xlu0.b32.cont [15/16] %v56, 128
    %853 = vxpose.xlu0.b32.end [16/16] %v57, 128
    %v854 = vpop.trf.xlu0
    %v855 = vpop.trf.xlu0
    %v856 = vpop.trf.xlu0
    %v857 = vpop.trf.xlu0
    %v858 = vpop.trf.xlu0
    %v859 = vpop.trf.xlu0
    %v860 = vpop.trf.xlu0
    %v861 = vpop.trf.xlu0
    %v862 = vpop.trf.xlu0
    %v863 = vpop.trf.xlu0
    %v864 = vpop.trf.xlu0
    %v865 = vpop.trf.xlu0
    %v866 = vpop.trf.xlu0
    %v867 = vpop.trf.xlu0
    %v868 = vpop.trf.xlu0
    %v869 = vpop.trf.xlu0
    %870 = vxpose.xlu0.b32.start [1/16] %v58, 128
    %871 = vxpose.xlu0.b32.cont [2/16] %v59, 128
    %872 = vxpose.xlu0.b32.cont [3/16] %v60, 128
    %873 = vxpose.xlu0.b32.cont [4/16] %v61, 128
    %874 = vxpose.xlu0.b32.cont [5/16] %v62, 128
    %875 = vxpose.xlu0.b32.cont [6/16] %v63, 128
    %876 = vxpose.xlu0.b32.cont [7/16] %v64, 128
    %877 = vxpose.xlu0.b32.cont [8/16] %v65, 128
    %878 = vxpose.xlu0.b32.cont [9/16] %v66, 128
    %879 = vxpose.xlu0.b32.cont [10/16] %v67, 128
    %880 = vxpose.xlu0.b32.cont [11/16] %v68, 128
    %881 = vxpose.xlu0.b32.cont [12/16] %v69, 128
    %882 = vxpose.xlu0.b32.cont [13/16] %v70, 128
    %883 = vxpose.xlu0.b32.cont [14/16] %v71, 128
    %884 = vxpose.xlu0.b32.cont [15/16] %v72, 128
    %885 = vxpose.xlu0.b32.end [16/16] %v73, 128
    %v886 = vpop.trf.xlu0
    %v887 = vpop.trf.xlu0
    %v888 = vpop.trf.xlu0
    %v889 = vpop.trf.xlu0
    %v890 = vpop.trf.xlu0
    %v891 = vpop.trf.xlu0
    %v892 = vpop.trf.xlu0
    %v893 = vpop.trf.xlu0
    %v894 = vpop.trf.xlu0
    %v895 = vpop.trf.xlu0
    %v896 = vpop.trf.xlu0
    %v897 = vpop.trf.xlu0
    %v898 = vpop.trf.xlu0
    %v899 = vpop.trf.xlu0
    %v900 = vpop.trf.xlu0
    %v901 = vpop.trf.xlu0
    %902 = vxpose.xlu0.b32.start [1/16] %v74, 128
    %903 = vxpose.xlu0.b32.cont [2/16] %v75, 128
    %904 = vxpose.xlu0.b32.cont [3/16] %v76, 128
    %905 = vxpose.xlu0.b32.cont [4/16] %v77, 128
    %906 = vxpose.xlu0.b32.cont [5/16] %v78, 128
    %907 = vxpose.xlu0.b32.cont [6/16] %v79, 128
    %908 = vxpose.xlu0.b32.cont [7/16] %v80, 128
    %909 = vxpose.xlu0.b32.cont [8/16] %v81, 128
    %910 = vxpose.xlu0.b32.cont [9/16] %v82, 128
    %911 = vxpose.xlu0.b32.cont [10/16] %v83, 128
    %912 = vxpose.xlu0.b32.cont [11/16] %v84, 128
    %913 = vxpose.xlu0.b32.cont [12/16] %v85, 128
    %914 = vxpose.xlu0.b32.cont [13/16] %v86, 128
    %915 = vxpose.xlu0.b32.cont [14/16] %v87, 128
    %916 = vxpose.xlu0.b32.cont [15/16] %v88, 128
    %917 = vxpose.xlu0.b32.end [16/16] %v89, 128
    %v918 = vpop.trf.xlu0
    %v919 = vpop.trf.xlu0
    %v920 = vpop.trf.xlu0
    %v921 = vpop.trf.xlu0
    %v922 = vpop.trf.xlu0
    %v923 = vpop.trf.xlu0
    %v924 = vpop.trf.xlu0
    %v925 = vpop.trf.xlu0
    %v926 = vpop.trf.xlu0
    %v927 = vpop.trf.xlu0
    %v928 = vpop.trf.xlu0
    %v929 = vpop.trf.xlu0
    %v930 = vpop.trf.xlu0
    %v931 = vpop.trf.xlu0
    %v932 = vpop.trf.xlu0
    %v933 = vpop.trf.xlu0
    %934 = vxpose.xlu0.b32.start [1/16] %v90, 128
    %935 = vxpose.xlu0.b32.cont [2/16] %v91, 128
    %936 = vxpose.xlu0.b32.cont [3/16] %v92, 128
    %937 = vxpose.xlu0.b32.cont [4/16] %v93, 128
    %938 = vxpose.xlu0.b32.cont [5/16] %v94, 128
    %939 = vxpose.xlu0.b32.cont [6/16] %v95, 128
    %940 = vxpose.xlu0.b32.cont [7/16] %v96, 128
    %941 = vxpose.xlu0.b32.cont [8/16] %v97, 128
    %942 = vxpose.xlu0.b32.cont [9/16] %v98, 128
    %943 = vxpose.xlu0.b32.cont [10/16] %v99, 128
    %944 = vxpose.xlu0.b32.cont [11/16] %v100, 128
    %945 = vxpose.xlu0.b32.cont [12/16] %v101, 128
    %946 = vxpose.xlu0.b32.cont [13/16] %v102, 128
    %947 = vxpose.xlu0.b32.cont [14/16] %v103, 128
    %948 = vxpose.xlu0.b32.cont [15/16] %v104, 128
    %949 = vxpose.xlu0.b32.end [16/16] %v105, 128
    %v950 = vpop.trf.xlu0
    %v951 = vpop.trf.xlu0
    %v952 = vpop.trf.xlu0
    %v953 = vpop.trf.xlu0
    %v954 = vpop.trf.xlu0
    %v955 = vpop.trf.xlu0
    %v956 = vpop.trf.xlu0
    %v957 = vpop.trf.xlu0
    %v958 = vpop.trf.xlu0
    %v959 = vpop.trf.xlu0
    %v960 = vpop.trf.xlu0
    %v961 = vpop.trf.xlu0
    %v962 = vpop.trf.xlu0
    %v963 = vpop.trf.xlu0
    %v964 = vpop.trf.xlu0
    %v965 = vpop.trf.xlu0
    %966 = vxpose.xlu0.b32.start [1/16] %v106, 128
    %967 = vxpose.xlu0.b32.cont [2/16] %v107, 128
    %968 = vxpose.xlu0.b32.cont [3/16] %v108, 128
    %969 = vxpose.xlu0.b32.cont [4/16] %v109, 128
    %970 = vxpose.xlu0.b32.cont [5/16] %v110, 128
    %971 = vxpose.xlu0.b32.cont [6/16] %v111, 128
    %972 = vxpose.xlu0.b32.cont [7/16] %v112, 128
    %973 = vxpose.xlu0.b32.cont [8/16] %v113, 128
    %974 = vxpose.xlu0.b32.cont [9/16] %v114, 128
    %975 = vxpose.xlu0.b32.cont [10/16] %v115, 128
    %976 = vxpose.xlu0.b32.cont [11/16] %v116, 128
    %977 = vxpose.xlu0.b32.cont [12/16] %v117, 128
    %978 = vxpose.xlu0.b32.cont [13/16] %v118, 128
    %979 = vxpose.xlu0.b32.cont [14/16] %v119, 128
    %980 = vxpose.xlu0.b32.cont [15/16] %v120, 128
    %981 = vxpose.xlu0.b32.end [16/16] %v121, 128
    %v982 = vpop.trf.xlu0
    %v983 = vpop.trf.xlu0
    %v984 = vpop.trf.xlu0
    %v985 = vpop.trf.xlu0
    %v986 = vpop.trf.xlu0
    %v987 = vpop.trf.xlu0
    %v988 = vpop.trf.xlu0
    %v989 = vpop.trf.xlu0
    %v990 = vpop.trf.xlu0
    %v991 = vpop.trf.xlu0
    %v992 = vpop.trf.xlu0
    %v993 = vpop.trf.xlu0
    %v994 = vpop.trf.xlu0
    %v995 = vpop.trf.xlu0
    %v996 = vpop.trf.xlu0
    %v997 = vpop.trf.xlu0
    %998 = vxpose.xlu0.b32.start [1/16] %v122, 128
    %999 = vxpose.xlu0.b32.cont [2/16] %v123, 128
    %1000 = vxpose.xlu0.b32.cont [3/16] %v124, 128
    %1001 = vxpose.xlu0.b32.cont [4/16] %v125, 128
    %1002 = vxpose.xlu0.b32.cont [5/16] %v126, 128
    %1003 = vxpose.xlu0.b32.cont [6/16] %v127, 128
    %1004 = vxpose.xlu0.b32.cont [7/16] %v128, 128
    %1005 = vxpose.xlu0.b32.cont [8/16] %v129, 128
    %1006 = vxpose.xlu0.b32.cont [9/16] %v130, 128
    %1007 = vxpose.xlu0.b32.cont [10/16] %v131, 128
    %1008 = vxpose.xlu0.b32.cont [11/16] %v132, 128
    %1009 = vxpose.xlu0.b32.cont [12/16] %v133, 128
    %1010 = vxpose.xlu0.b32.cont [13/16] %v134, 128
    %1011 = vxpose.xlu0.b32.cont [14/16] %v135, 128
    %1012 = vxpose.xlu0.b32.cont [15/16] %v136, 128
    %1013 = vxpose.xlu0.b32.end [16/16] %v137, 128
    %v1014 = vpop.trf.xlu0
    %v1015 = vpop.trf.xlu0
    %v1016 = vpop.trf.xlu0
    %v1017 = vpop.trf.xlu0
    %v1018 = vpop.trf.xlu0
    %v1019 = vpop.trf.xlu0
    %v1020 = vpop.trf.xlu0
    %v1021 = vpop.trf.xlu0
    %v1022 = vpop.trf.xlu0
    %v1023 = vpop.trf.xlu0
    %v1024 = vpop.trf.xlu0
    %v1025 = vpop.trf.xlu0
    %v1026 = vpop.trf.xlu0
    %v1027 = vpop.trf.xlu0
    %v1028 = vpop.trf.xlu0
    %v1029 = vpop.trf.xlu0
    %1030 = vxpose.xlu0.b32.start [1/16] %v138, 128
    %1031 = vxpose.xlu0.b32.cont [2/16] %v139, 128
    %1032 = vxpose.xlu0.b32.cont [3/16] %v140, 128
    %1033 = vxpose.xlu0.b32.cont [4/16] %v141, 128
    %1034 = vxpose.xlu0.b32.cont [5/16] %v142, 128
    %1035 = vxpose.xlu0.b32.cont [6/16] %v143, 128
    %1036 = vxpose.xlu0.b32.cont [7/16] %v144, 128
    %1037 = vxpose.xlu0.b32.cont [8/16] %v145, 128
    %1038 = vxpose.xlu0.b32.cont [9/16] %v146, 128
    %1039 = vxpose.xlu0.b32.cont [10/16] %v147, 128
    %1040 = vxpose.xlu0.b32.cont [11/16] %v148, 128
    %1041 = vxpose.xlu0.b32.cont [12/16] %v149, 128
    %1042 = vxpose.xlu0.b32.cont [13/16] %v150, 128
    %1043 = vxpose.xlu0.b32.cont [14/16] %v151, 128
    %1044 = vxpose.xlu0.b32.cont [15/16] %v152, 128
    %1045 = vxpose.xlu0.b32.end [16/16] %v153, 128
    %v1046 = vpop.trf.xlu0
    %v1047 = vpop.trf.xlu0
    %v1048 = vpop.trf.xlu0
    %v1049 = vpop.trf.xlu0
    %v1050 = vpop.trf.xlu0
    %v1051 = vpop.trf.xlu0
    %v1052 = vpop.trf.xlu0
    %v1053 = vpop.trf.xlu0
    %v1054 = vpop.trf.xlu0
    %v1055 = vpop.trf.xlu0
    %v1056 = vpop.trf.xlu0
    %v1057 = vpop.trf.xlu0
    %v1058 = vpop.trf.xlu0
    %v1059 = vpop.trf.xlu0
    %v1060 = vpop.trf.xlu0
    %v1061 = vpop.trf.xlu0
    %1062 = vmatprep.subr.mxu0 0.0
    %1063 = vmatpush1.msra.mxu0 %v26
    %1064 = vmatprep.subr.mxu0 0.0
    %1065 = vmatpush1.msra.mxu0 %v27
    %1066 = vmatprep.subr.mxu0 0.0
    %1067 = vmatpush1.msra.mxu0 %v28
    %1068 = vmatprep.subr.mxu0 0.0
    %1069 = vmatpush1.msra.mxu0 %v29
    %1070 = vmatprep.subr.mxu0 0.0
    %1071 = vmatpush1.msra.mxu0 %v30
    %1072 = vmatprep.subr.mxu0 0.0
    %1073 = vmatpush1.msra.mxu0 %v31
    %1074 = vmatprep.subr.mxu0 0.0
    %1075 = vmatpush1.msra.mxu0 %v32
    %1076 = vmatprep.subr.mxu0 0.0
    %1077 = vmatpush1.msra.mxu0 %v33
    %1078 = vmatprep.subr.mxu0 0.0
    %1079 = vmatpush1.msra.mxu0 %v34
    %1080 = vmatprep.subr.mxu0 0.0
    %1081 = vmatpush1.msra.mxu0 %v35
    %1082 = vmatprep.subr.mxu0 0.0
    %1083 = vmatpush1.msra.mxu0 %v36
    %1084 = vmatprep.subr.mxu0 0.0
    %1085 = vmatpush1.msra.mxu0 %v37
    %1086 = vmatprep.subr.mxu0 0.0
    %1087 = vmatpush1.msra.mxu0 %v38
    %1088 = vmatprep.subr.mxu0 0.0
    %1089 = vmatpush1.msra.mxu0 %v39
    %1090 = vmatprep.subr.mxu0 0.0
    %1091 = vmatpush1.msra.mxu0 %v40
    %1092 = vmatprep.subr.mxu0 0.0
    %1093 = vmatpush1.msra.mxu0 %v41
    %1094 = vmatprep.subr.mxu0 0.0
    %1095 = vmatpush1.msra.mxu0 %v42
    %1096 = vmatprep.subr.mxu0 0.0
    %1097 = vmatpush1.msra.mxu0 %v43
    %1098 = vmatprep.subr.mxu0 0.0
    %1099 = vmatpush1.msra.mxu0 %v44
    %1100 = vmatprep.subr.mxu0 0.0
    %1101 = vmatpush1.msra.mxu0 %v45
    %1102 = vmatprep.subr.mxu0 0.0
    %1103 = vmatpush1.msra.mxu0 %v46
    %1104 = vmatprep.subr.mxu0 0.0
    %1105 = vmatpush1.msra.mxu0 %v47
    %1106 = vmatprep.subr.mxu0 0.0
    %1107 = vmatpush1.msra.mxu0 %v48
    %1108 = vmatprep.subr.mxu0 0.0
    %1109 = vmatpush1.msra.mxu0 %v49
    %1110 = vmatprep.subr.mxu0 0.0
    %1111 = vmatpush1.msra.mxu0 %v50
    %1112 = vmatprep.subr.mxu0 0.0
    %1113 = vmatpush1.msra.mxu0 %v51
    %1114 = vmatprep.subr.mxu0 0.0
    %1115 = vmatpush1.msra.mxu0 %v52
    %1116 = vmatprep.subr.mxu0 0.0
    %1117 = vmatpush1.msra.mxu0 %v53
    %1118 = vmatprep.subr.mxu0 0.0
    %1119 = vmatpush1.msra.mxu0 %v54
    %1120 = vmatprep.subr.mxu0 0.0
    %1121 = vmatpush1.msra.mxu0 %v55
    %1122 = vmatprep.subr.mxu0 0.0
    %1123 = vmatpush1.msra.mxu0 %v56
    %1124 = vmatprep.subr.mxu0 0.0
    %1125 = vmatpush1.msra.mxu0 %v57
    %1126 = vmatprep.mubr.f32.mxu0 %v854
    %1127 = vmatmul.mubr.f32.gmra.mrb[0].mxu0 %v822
    %v1128 = vpop.f32.mrb[0].mxu0
    %v1129 = vadd.f32 0.0, %v1128
    %v1130 = vpop.f32.mrb[0].mxu0
    %1131 = vmatprep.mubr.f32.mxu0 %v855
    %1132 = vmatmul.mubr.f32.gmra.mrb[0].mxu0 %v823
    %v1133 = vpop.f32.mrb[0].mxu0
    %v1134 = vadd.f32 0.0, %v1133
    %v1135 = vpop.f32.mrb[0].mxu0
    %1136 = vmatprep.mubr.f32.mxu0 %v856
    %1137 = vmatmul.mubr.f32.gmra.mrb[0].mxu0 %v824
    %v1138 = vpop.f32.mrb[0].mxu0
    %v1139 = vadd.f32 0.0, %v1138
    %v1140 = vpop.f32.mrb[0].mxu0
    %1141 = vmatprep.mubr.f32.mxu0 %v857
    %1142 = vmatmul.mubr.f32.gmra.mrb[0].mxu0 %v825
    %v1143 = vpop.f32.mrb[0].mxu0
    %v1144 = vadd.f32 0.0, %v1143
    %v1145 = vpop.f32.mrb[0].mxu0
    %1146 = vdwg.mxu0
    %1147 = vmatprep.subr.mxu0 0.0
    %1148 = vmatpush1.msra.mxu0 %v58
    %1149 = vmatprep.subr.mxu0 0.0
    %1150 = vmatpush1.msra.mxu0 %v59
    %1151 = vmatprep.subr.mxu0 0.0
    %1152 = vmatpush1.msra.mxu0 %v60
    %1153 = vmatprep.subr.mxu0 0.0
    %1154 = vmatpush1.msra.mxu0 %v61
    %1155 = vmatprep.subr.mxu0 0.0
    %1156 = vmatpush1.msra.mxu0 %v62
    %1157 = vmatprep.subr.mxu0 0.0
    %1158 = vmatpush1.msra.mxu0 %v63
    %1159 = vmatprep.subr.mxu0 0.0
    %1160 = vmatpush1.msra.mxu0 %v64
    %1161 = vmatprep.subr.mxu0 0.0
    %1162 = vmatpush1.msra.mxu0 %v65
    %1163 = vmatprep.subr.mxu0 0.0
    %1164 = vmatpush1.msra.mxu0 %v66
    %1165 = vmatprep.subr.mxu0 0.0
    %1166 = vmatpush1.msra.mxu0 %v67
    %1167 = vmatprep.subr.mxu0 0.0
    %1168 = vmatpush1.msra.mxu0 %v68
    %1169 = vmatprep.subr.mxu0 0.0
    %1170 = vmatpush1.msra.mxu0 %v69
    %1171 = vmatprep.subr.mxu0 0.0
    %1172 = vmatpush1.msra.mxu0 %v70
    %1173 = vmatprep.subr.mxu0 0.0
    %1174 = vmatpush1.msra.mxu0 %v71
    %1175 = vmatprep.subr.mxu0 0.0
    %1176 = vmatpush1.msra.mxu0 %v72
    %1177 = vmatprep.subr.mxu0 0.0
    %1178 = vmatpush1.msra.mxu0 %v73
    %1179 = vmatprep.subr.mxu0 0.0
    %1180 = vmatpush1.msra.mxu0 %v74
    %1181 = vmatprep.subr.mxu0 0.0
    %1182 = vmatpush1.msra.mxu0 %v75
    %1183 = vmatprep.subr.mxu0 0.0
    %1184 = vmatpush1.msra.mxu0 %v76
    %1185 = vmatprep.subr.mxu0 0.0
    %1186 = vmatpush1.msra.mxu0 %v77
    %1187 = vmatprep.subr.mxu0 0.0
    %1188 = vmatpush1.msra.mxu0 %v78
    %1189 = vmatprep.subr.mxu0 0.0
    %1190 = vmatpush1.msra.mxu0 %v79
    %1191 = vmatprep.subr.mxu0 0.0
    %1192 = vmatpush1.msra.mxu0 %v80
    %1193 = vmatprep.subr.mxu0 0.0
    %1194 = vmatpush1.msra.mxu0 %v81
    %1195 = vmatprep.subr.mxu0 0.0
    %1196 = vmatpush1.msra.mxu0 %v82
    %1197 = vmatprep.subr.mxu0 0.0
    %1198 = vmatpush1.msra.mxu0 %v83
    %1199 = vmatprep.subr.mxu0 0.0
    %1200 = vmatpush1.msra.mxu0 %v84
    %1201 = vmatprep.subr.mxu0 0.0
    %1202 = vmatpush1.msra.mxu0 %v85
    %1203 = vmatprep.subr.mxu0 0.0
    %1204 = vmatpush1.msra.mxu0 %v86
    %1205 = vmatprep.subr.mxu0 0.0
    %1206 = vmatpush1.msra.mxu0 %v87
    %1207 = vmatprep.subr.mxu0 0.0
    %1208 = vmatpush1.msra.mxu0 %v88
    %1209 = vmatprep.subr.mxu0 0.0
    %1210 = vmatpush1.msra.mxu0 %v89
    %1211 = vmatprep.mubr.f32.mxu0 %v918
    %1212 = vmatmul.mubr.f32.gmra.mrb[0].mxu0 %v886
    %v1213 = vpop.f32.mrb[0].mxu0
    %v1214 = vadd.f32 %v1129, %v1213
    %v1215 = vpop.f32.mrb[0].mxu0
    %1216 = vmatprep.mubr.f32.mxu0 %v919
    %1217 = vmatmul.mubr.f32.gmra.mrb[0].mxu0 %v887
    %v1218 = vpop.f32.mrb[0].mxu0
    %v1219 = vadd.f32 %v1134, %v1218
    %v1220 = vpop.f32.mrb[0].mxu0
    %1221 = vmatprep.mubr.f32.mxu0 %v920
    %1222 = vmatmul.mubr.f32.gmra.mrb[0].mxu0 %v888
    %v1223 = vpop.f32.mrb[0].mxu0
    %v1224 = vadd.f32 %v1139, %v1223
    %v1225 = vpop.f32.mrb[0].mxu0
    %1226 = vmatprep.mubr.f32.mxu0 %v921
    %1227 = vmatmul.mubr.f32.gmra.mrb[0].mxu0 %v889
    %v1228 = vpop.f32.mrb[0].mxu0
    %v1229 = vadd.f32 %v1144, %v1228
    %v1230 = vpop.f32.mrb[0].mxu0
    %1231 = vdwg.mxu0
    %1232 = vmatprep.subr.mxu0 0.0
    %1233 = vmatpush1.msra.mxu0 %v90
    %1234 = vmatprep.subr.mxu0 0.0
    %1235 = vmatpush1.msra.mxu0 %v91
    %1236 = vmatprep.subr.mxu0 0.0
    %1237 = vmatpush1.msra.mxu0 %v92
    %1238 = vmatprep.subr.mxu0 0.0
    %1239 = vmatpush1.msra.mxu0 %v93
    %1240 = vmatprep.subr.mxu0 0.0
    %1241 = vmatpush1.msra.mxu0 %v94
    %1242 = vmatprep.subr.mxu0 0.0
    %1243 = vmatpush1.msra.mxu0 %v95
    %1244 = vmatprep.subr.mxu0 0.0
    %1245 = vmatpush1.msra.mxu0 %v96
    %1246 = vmatprep.subr.mxu0 0.0
    %1247 = vmatpush1.msra.mxu0 %v97
    %1248 = vmatprep.subr.mxu0 0.0
    %1249 = vmatpush1.msra.mxu0 %v98
    %1250 = vmatprep.subr.mxu0 0.0
    %1251 = vmatpush1.msra.mxu0 %v99
    %1252 = vmatprep.subr.mxu0 0.0
    %1253 = vmatpush1.msra.mxu0 %v100
    %1254 = vmatprep.subr.mxu0 0.0
    %1255 = vmatpush1.msra.mxu0 %v101
    %1256 = vmatprep.subr.mxu0 0.0
    %1257 = vmatpush1.msra.mxu0 %v102
    %1258 = vmatprep.subr.mxu0 0.0
    %1259 = vmatpush1.msra.mxu0 %v103
    %1260 = vmatprep.subr.mxu0 0.0
    %1261 = vmatpush1.msra.mxu0 %v104
    %1262 = vmatprep.subr.mxu0 0.0
    %1263 = vmatpush1.msra.mxu0 %v105
    %1264 = vmatprep.subr.mxu0 0.0
    %1265 = vmatpush1.msra.mxu0 %v106
    %1266 = vmatprep.subr.mxu0 0.0
    %1267 = vmatpush1.msra.mxu0 %v107
    %1268 = vmatprep.subr.mxu0 0.0
    %1269 = vmatpush1.msra.mxu0 %v108
    %1270 = vmatprep.subr.mxu0 0.0
    %1271 = vmatpush1.msra.mxu0 %v109
    %1272 = vmatprep.subr.mxu0 0.0
    %1273 = vmatpush1.msra.mxu0 %v110
    %1274 = vmatprep.subr.mxu0 0.0
    %1275 = vmatpush1.msra.mxu0 %v111
    %1276 = vmatprep.subr.mxu0 0.0
    %1277 = vmatpush1.msra.mxu0 %v112
    %1278 = vmatprep.subr.mxu0 0.0
    %1279 = vmatpush1.msra.mxu0 %v113
    %1280 = vmatprep.subr.mxu0 0.0
    %1281 = vmatpush1.msra.mxu0 %v114
    %1282 = vmatprep.subr.mxu0 0.0
    %1283 = vmatpush1.msra.mxu0 %v115
    %1284 = vmatprep.subr.mxu0 0.0
    %1285 = vmatpush1.msra.mxu0 %v116
    %1286 = vmatprep.subr.mxu0 0.0
    %1287 = vmatpush1.msra.mxu0 %v117
    %1288 = vmatprep.subr.mxu0 0.0
    %1289 = vmatpush1.msra.mxu0 %v118
    %1290 = vmatprep.subr.mxu0 0.0
    %1291 = vmatpush1.msra.mxu0 %v119
    %1292 = vmatprep.subr.mxu0 0.0
    %1293 = vmatpush1.msra.mxu0 %v120
    %1294 = vmatprep.subr.mxu0 0.0
    %1295 = vmatpush1.msra.mxu0 %v121
    %1296 = vmatprep.mubr.f32.mxu0 %v982
    %1297 = vmatmul.mubr.f32.gmra.mrb[0].mxu0 %v950
    %v1298 = vpop.f32.mrb[0].mxu0
    %v1299 = vadd.f32 %v1214, %v1298
    %v1300 = vpop.f32.mrb[0].mxu0
    %1301 = vmatprep.mubr.f32.mxu0 %v983
    %1302 = vmatmul.mubr.f32.gmra.mrb[0].mxu0 %v951
    %v1303 = vpop.f32.mrb[0].mxu0
    %v1304 = vadd.f32 %v1219, %v1303
    %v1305 = vpop.f32.mrb[0].mxu0
    %1306 = vmatprep.mubr.f32.mxu0 %v984
    %1307 = vmatmul.mubr.f32.gmra.mrb[0].mxu0 %v952
    %v1308 = vpop.f32.mrb[0].mxu0
    %v1309 = vadd.f32 %v1224, %v1308
    %v1310 = vpop.f32.mrb[0].mxu0
    %1311 = vmatprep.mubr.f32.mxu0 %v985
    %1312 = vmatmul.mubr.f32.gmra.mrb[0].mxu0 %v953
    %v1313 = vpop.f32.mrb[0].mxu0
    %v1314 = vadd.f32 %v1229, %v1313
    %v1315 = vpop.f32.mrb[0].mxu0
    %1316 = vdwg.mxu0
    %1317 = vmatprep.subr.mxu0 0.0
    %1318 = vmatpush1.msra.mxu0 %v122
    %1319 = vmatprep.subr.mxu0 0.0
    %1320 = vmatpush1.msra.mxu0 %v123
    %1321 = vmatprep.subr.mxu0 0.0
    %1322 = vmatpush1.msra.mxu0 %v124
    %1323 = vmatprep.subr.mxu0 0.0
    %1324 = vmatpush1.msra.mxu0 %v125
    %1325 = vmatprep.subr.mxu0 0.0
    %1326 = vmatpush1.msra.mxu0 %v126
    %1327 = vmatprep.subr.mxu0 0.0
    %1328 = vmatpush1.msra.mxu0 %v127
    %1329 = vmatprep.subr.mxu0 0.0
    %1330 = vmatpush1.msra.mxu0 %v128
    %1331 = vmatprep.subr.mxu0 0.0
    %1332 = vmatpush1.msra.mxu0 %v129
    %1333 = vmatprep.subr.mxu0 0.0
    %1334 = vmatpush1.msra.mxu0 %v130
    %1335 = vmatprep.subr.mxu0 0.0
    %1336 = vmatpush1.msra.mxu0 %v131
    %1337 = vmatprep.subr.mxu0 0.0
    %1338 = vmatpush1.msra.mxu0 %v132
    %1339 = vmatprep.subr.mxu0 0.0
    %1340 = vmatpush1.msra.mxu0 %v133
    %1341 = vmatprep.subr.mxu0 0.0
    %1342 = vmatpush1.msra.mxu0 %v134
    %1343 = vmatprep.subr.mxu0 0.0
    %1344 = vmatpush1.msra.mxu0 %v135
    %1345 = vmatprep.subr.mxu0 0.0
    %1346 = vmatpush1.msra.mxu0 %v136
    %1347 = vmatprep.subr.mxu0 0.0
    %1348 = vmatpush1.msra.mxu0 %v137
    %1349 = vmatprep.subr.mxu0 0.0
    %1350 = vmatpush1.msra.mxu0 %v138
    %1351 = vmatprep.subr.mxu0 0.0
    %1352 = vmatpush1.msra.mxu0 %v139
    %1353 = vmatprep.subr.mxu0 0.0
    %1354 = vmatpush1.msra.mxu0 %v140
    %1355 = vmatprep.subr.mxu0 0.0
    %1356 = vmatpush1.msra.mxu0 %v141
    %1357 = vmatprep.subr.mxu0 0.0
    %1358 = vmatpush1.msra.mxu0 %v142
    %1359 = vmatprep.subr.mxu0 0.0
    %1360 = vmatpush1.msra.mxu0 %v143
    %1361 = vmatprep.subr.mxu0 0.0
    %1362 = vmatpush1.msra.mxu0 %v144
    %1363 = vmatprep.subr.mxu0 0.0
    %1364 = vmatpush1.msra.mxu0 %v145
    %1365 = vmatprep.subr.mxu0 0.0
    %1366 = vmatpush1.msra.mxu0 %v146
    %1367 = vmatprep.subr.mxu0 0.0
    %1368 = vmatpush1.msra.mxu0 %v147
    %1369 = vmatprep.subr.mxu0 0.0
    %1370 = vmatpush1.msra.mxu0 %v148
    %1371 = vmatprep.subr.mxu0 0.0
    %1372 = vmatpush1.msra.mxu0 %v149
    %1373 = vmatprep.subr.mxu0 0.0
    %1374 = vmatpush1.msra.mxu0 %v150
    %1375 = vmatprep.subr.mxu0 0.0
    %1376 = vmatpush1.msra.mxu0 %v151
    %1377 = vmatprep.subr.mxu0 0.0
    %1378 = vmatpush1.msra.mxu0 %v152
    %1379 = vmatprep.subr.mxu0 0.0
    %1380 = vmatpush1.msra.mxu0 %v153
    %1381 = vmatprep.mubr.f32.mxu0 %v1046
    %1382 = vmatmul.mubr.f32.gmra.mrb[0].mxu0 %v1014
    %v1383 = vpop.f32.mrb[0].mxu0
    %v1384 = vadd.f32 %v1299, %v1383
    %v1385 = vpop.f32.mrb[0].mxu0
    %1386 = vmatprep.mubr.f32.mxu0 %v1047
    %1387 = vmatmul.mubr.f32.gmra.mrb[0].mxu0 %v1015
    %v1388 = vpop.f32.mrb[0].mxu0
    %v1389 = vadd.f32 %v1304, %v1388
    %v1390 = vpop.f32.mrb[0].mxu0
    %1391 = vmatprep.mubr.f32.mxu0 %v1048
    %1392 = vmatmul.mubr.f32.gmra.mrb[0].mxu0 %v1016
    %v1393 = vpop.f32.mrb[0].mxu0
    %v1394 = vadd.f32 %v1309, %v1393
    %v1395 = vpop.f32.mrb[0].mxu0
    %1396 = vmatprep.mubr.f32.mxu0 %v1049
    %1397 = vmatmul.mubr.f32.gmra.mrb[0].mxu0 %v1017
    %v1398 = vpop.f32.mrb[0].mxu0
    %v1399 = vadd.f32 %v1314, %v1398
    %v1400 = vpop.f32.mrb[0].mxu0
    %1401 = vdwg.mxu0
    %v1402 = vld [vmem:[%s4] sm:$0x1]
    %v1403 = vld [vmem:[%s5] sm:$0x1]
    %v1404 = vld [vmem:[%s3] sm:$0x3]
    %v1406 = vlaneseq
    %v1407 = vshrl.u32 %v1406, 7
    %v1408 = vsub.s32 0, %v1407
    %v1409 = vrot.slane %v1402, %v1408
    %v1411 = vadd.f32 %v477, %v1409
    %v1412 = vtanh.pop %v1411
    %v1414 = vlaneseq
    %v1415 = vshrl.u32 %v1414, 7
    %v1416 = vsub.s32 0, %v1415
    %v1417 = vrot.slane %v1403, %v1416
    %v1419 = vmul.f32 %v1412, %v1417
    %vm1420 = vcmask 254976
    %v1421 = vsel %vm1420, %v1419, 0.0
    %1422 = vadd.xlane.f32.xlu0 %v1421
    %v1423 = vpop.xlane.xlu0 %1422
    %v1424 = vadd.f32 %v803, %v1409
    %v1425 = vtanh.pop %v1424
    %v1426 = vmul.f32 %v1425, %v1417
    %v1427 = vsel %vm1420, %v1426, 0.0
    %1428 = vadd.xlane.f32.xlu0 %v1427
    %v1429 = vpop.xlane.xlu0 %1428
    %v1430 = vsub.f32 %v1429, %v1423
    %vm1431 = vcmask 1024
    %v1432 = vsel %vm1431, %v1430, 0.0
    %1433 = vadd.xlane.f32.xlu0 %v1432
    %v1434 = vpop.xlane.xlu0 %1433
    %v1435 = vrot.slane %v1434, 4
    %v1436 = vadd.f32 %v1434, %v1435
    %v1437 = vrot.slane %v1436, 2
    %v1438 = vadd.f32 %v1436, %v1437
    %v1439 = vrot.slane %v1438, 1
    %v1440 = vadd.f32 %v1438, %v1439
    %s1441 = vtos %v1440
    %v1442 = vrcp.pop 2.0
    %s1443 = vtos %v1442
    %s1444 = smul.f32 %s1441, %s1443
    %1446 = vset.pattern.permute.xlu0 0
    %1447 = vperm.xlu0 %1446, %v1404
    %v1448 = vpop.permute.xlu0 %1447
    %v1450 = vmul.f32 %v1448, %v477
    %v1451 = vsub.f32 1.0, %v1404
    %1453 = vset.pattern.permute.xlu0 0
    %1454 = vperm.xlu0 %1453, %v1451
    %v1455 = vpop.permute.xlu0 %1454
    %v1457 = vmul.f32 %v1455, %v803
    %v1458 = vadd.f32 %v1450, %v1457
    %v1459 = vadd.f32 %v1458, %v1409
    %v1460 = vtanh.pop %v1459
    %v1461 = vmul.f32 %v1460, %v1460
    %v1462 = vsub.f32 1.0, %v1461
    %v1463 = vmul.f32 %v1462, %v1417
    %vm1464 = vcmask 261120
    %v1466 = vsel %vm1464, %v1463, 0
    %1468 = vmatprep.subr.mxu0 0.0
    %1469 = vmatpush1.msra.mxu0 %v1384
    %1470 = vmatprep.subr.mxu0 0.0
    %1471 = vmatpush1.msra.mxu0 %v1389
    %1472 = vmatprep.subr.mxu0 0.0
    %1473 = vmatpush1.msra.mxu0 %v1394
    %1474 = vmatprep.subr.mxu0 0.0
    %1475 = vmatpush1.msra.mxu0 %v1399
    %1476 = vmatprep.subr.mxu0 0.0
    %1477 = vmatpush1.msra.mxu0 0.0
    %1478 = vmatprep.subr.mxu0 0.0
    %1479 = vmatpush1.msra.mxu0 0.0
    %1480 = vmatprep.subr.mxu0 0.0
    %1481 = vmatpush1.msra.mxu0 0.0
    %1482 = vmatprep.subr.mxu0 0.0
    %1483 = vmatpush1.msra.mxu0 0.0
    %1484 = vmatprep.subr.mxu0 0.0
    %1485 = vmatpush1.msra.mxu0 0.0
    %1486 = vmatprep.subr.mxu0 0.0
    %1487 = vmatpush1.msra.mxu0 0.0
    %1488 = vmatprep.subr.mxu0 0.0
    %1489 = vmatpush1.msra.mxu0 0.0
    %1490 = vmatprep.subr.mxu0 0.0
    %1491 = vmatpush1.msra.mxu0 0.0
    %1492 = vmatprep.subr.mxu0 0.0
    %1493 = vmatpush1.msra.mxu0 0.0
    %1494 = vmatprep.subr.mxu0 0.0
    %1495 = vmatpush1.msra.mxu0 0.0
    %1496 = vmatprep.subr.mxu0 0.0
    %1497 = vmatpush1.msra.mxu0 0.0
    %1498 = vmatprep.subr.mxu0 0.0
    %1499 = vmatpush1.msra.mxu0 0.0
    %1500 = vmatprep.subr.mxu0 0.0
    %1501 = vmatpush1.msra.mxu0 0.0
    %1502 = vmatprep.subr.mxu0 0.0
    %1503 = vmatpush1.msra.mxu0 0.0
    %1504 = vmatprep.subr.mxu0 0.0
    %1505 = vmatpush1.msra.mxu0 0.0
    %1506 = vmatprep.subr.mxu0 0.0
    %1507 = vmatpush1.msra.mxu0 0.0
    %1508 = vmatprep.subr.mxu0 0.0
    %1509 = vmatpush1.msra.mxu0 0.0
    %1510 = vmatprep.subr.mxu0 0.0
    %1511 = vmatpush1.msra.mxu0 0.0
    %1512 = vmatprep.subr.mxu0 0.0
    %1513 = vmatpush1.msra.mxu0 0.0
    %1514 = vmatprep.subr.mxu0 0.0
    %1515 = vmatpush1.msra.mxu0 0.0
    %1516 = vmatprep.subr.mxu0 0.0
    %1517 = vmatpush1.msra.mxu0 0.0
    %1518 = vmatprep.subr.mxu0 0.0
    %1519 = vmatpush1.msra.mxu0 0.0
    %1520 = vmatprep.subr.mxu0 0.0
    %1521 = vmatpush1.msra.mxu0 0.0
    %1522 = vmatprep.subr.mxu0 0.0
    %1523 = vmatpush1.msra.mxu0 0.0
    %1524 = vmatprep.subr.mxu0 0.0
    %1525 = vmatpush1.msra.mxu0 0.0
    %1526 = vmatprep.subr.mxu0 0.0
    %1527 = vmatpush1.msra.mxu0 0.0
    %1528 = vmatprep.subr.mxu0 0.0
    %1529 = vmatpush1.msra.mxu0 0.0
    %1530 = vmatprep.subr.mxu0 0.0
    %1531 = vmatpush1.msra.mxu0 0.0
    %1532 = vmatprep.mubr.f32.mxu0 0.0
    %1533 = vmatmul.mubr.f32.gmra.mrb[0].mxu0 %v1466
    %v1534 = vpop.f32.mrb[0].mxu0
    %v1535 = vadd.f32 0.0, %v1534
    %v1536 = vpop.f32.mrb[0].mxu0
    %1537 = vdwg.mxu0
    %v1538 = vmul.f32 %v1535, %v1463
    %v1539 = vsel %vm1420, %v1538, 0.0
    %1540 = vadd.xlane.f32.xlu0 %v1539
    %v1541 = vpop.xlane.xlu0 %1540
    %v1542 = vmax.f32 %v1541, 0.0
    %v1543 = vrsqrt.pop %v1542
    %v1544 = vmul.f32 %v1542, %v1543
    %vm1545 = vcmp.eq.f32.partialorder %v1542, inf
    %v1546 = vsel %vm1545, %v1542, %v1544
    %vm1547 = vcmp.eq.f32.partialorder %v1542, 0.0
    %v1548 = vand.u32 %v1542, 2147483648
    %v1549 = vsel %vm1547, %v1548, %v1546
    %v1550 = vsub.f32 %v1549, 1.0
    %v1551 = vmul.f32 %v1550, %v1550
    %v1552 = vsel %vm1431, %v1551, 0.0
    %1553 = vadd.xlane.f32.xlu0 %v1552
    %v1554 = vpop.xlane.xlu0 %1553
    %v1555 = vrot.slane %v1554, 4
    %v1556 = vadd.f32 %v1554, %v1555
    %v1557 = vrot.slane %v1556, 2
    %v1558 = vadd.f32 %v1556, %v1557
    %v1559 = vrot.slane %v1558, 1
    %v1560 = vadd.f32 %v1558, %v1559
    %s1561 = vtos %v1560
    %v1562 = vrcp.pop 2.0
    %s1563 = vtos %v1562
    %s1564 = smul.f32 %s1561, %s1563
    %s1565 = smul.f32 %s1564, 30.0
    %v1566 = vlaneseq
    %v1567 = vshrl.u32 %v1566, 7
    %v1568 = vlaneseq
    %v1569 = vand.u32 %v1568, 127
    %vm1570 = vcmp.eq.s32.totalorder %v1567, %v1569
    %v1571 = vsel %vm1570, %v1549, 0.0
    %vm1572 = vcmask 9216
    %v1573 = vsel %vm1572, %v1571, 0.0
    %v1574 = vrot.slane %v1573, 4
    %v1575 = vadd.f32 %v1573, %v1574
    %v1576 = vrot.slane %v1575, 2
    %v1577 = vadd.f32 %v1575, %v1576
    %v1578 = vrot.slane %v1577, 1
    %v1579 = vadd.f32 %v1577, %v1578
    %vm1580 = vcmask 8192
    %1581 = vst.msk [vmem:[#allocation2] sm:$0x1] %vm1580, %v1579
    %vm1582 = vcmp.eq.s32.totalorder %v1569, 0
    %s1583 = sadd.f32 %s1444, %s1565
    %v1584 = vstv %s1583
    %v1585 = vstv %s1444
    %v1586 = vsel %vm1582, %v1584, %v1585
    %1587 = vst.msk [vmem:[%s6] sm:$0x1] %vm1580, %v1586
    // Predicated region
    $region26: #{critic_loss.1} parent=1 // pred_check
      _
    $region27: #{critic_loss.1} parent=1 // pred_check_branch
      %1589 = sbr.rel (0) target = $region29
    $region28: #{critic_loss.1} parent=1 // pred_region
      _
    $region29: #{critic_loss.1} parent=1 // pred_fallthru
      _
    // Predicated region
    $region30: #{critic_loss.1} parent=1 // pred_check
      _
    $region31: #{critic_loss.1} parent=1 // pred_check_branch
      %1591 = sbr.rel (0) target = $region33
    $region32: #{critic_loss.1} parent=1 // pred_region
      %s1593 = ssub.s32 16, 16
      %1594 = vsyncadd [#allocation3], %s1593
      %s1596 = sshll.u32 [#allocation2], 4
      %s1597 = int_to_ptr.vmem [resolvable:$true] %s1596
      %1599 = dma.vmem_to_hbm [thread:$0]  %s1597, 16, %s7, [#allocation3]
    $region33: #{critic_loss.1} parent=1 // pred_fallthru
      _
    // Predicated region
    $region34: #{critic_loss.1} parent=1 // pred_check
      _
    $region35: #{critic_loss.1} parent=1 // pred_check_branch
      %1601 = sbr.rel (0) target = $region37
    $region36: #{critic_loss.1} parent=1 // pred_region
      _
    $region37: #{critic_loss.1} parent=1 // pred_fallthru
      _
    // Predicated region
    $region38: #{critic_loss.1} parent=1 // pred_check
      _
    $region39: #{critic_loss.1} parent=1 // pred_check_branch
      %1603 = sbr.rel (0) target = $region41
    $region40: #{critic_loss.1} parent=1 // pred_region
      %1604 = dma.done [#allocation3], 16
    $region41: #{critic_loss.1} parent=1 // pred_fallthru
      _
    %1605 = vsyncpa [#allocation3], 1

</llo_original>
